<compile_context>
chip_gen: v7x
topology: tpu7x:2x2x1
jax: 0.10.0
libtpu: 0.0.40
codegen_flags: <defaults>
</compile_context>

<pallas_src>
import jax
import jax.numpy as jnp
from jax.experimental import pallas as pl
from jax.experimental.pallas import tpu as pltpu

# ---- Small, self-consistent sizes (module-level constants in the original) ----
VECTOR_LENGTH = 64                 # -> input dim = VECTOR_LENGTH * 2 = 128
D_IN = VECTOR_LENGTH * 2           # 128 (one exact lane tile)
HIDDEN = 2000                      # fixed by the module
HIDDEN_PAD = 2048                  # zero-padded hidden dim: 16 exact lane tiles
FEATURE_VECTOR_LENGTH = 256        # output dim
DTYPE = jnp.float32                # module dtype (activations / biases / output)
WEIGHT_DTYPE = jnp.bfloat16        # MXU operand dtype (f32 accumulate)

H_CHUNK = 512                      # hidden-dim chunk per fused GEMM step
N_CHUNKS = HIDDEN_PAD // H_CHUNK   # 4


def net1_kernel(x_ref, w1_ref, b1_ref, w2_ref, b2_ref, o_ref):
    """One batch tile of the MLP, with the hidden dim processed in chunks.

    For each 512-lane hidden chunk c:
        h_c = ReLU(x @ W1[:, c] + b1[c])        (f32 epilogue, bf16 MXU operands)
        o  += h_c.bf16 @ W2[c, :]                (f32 accumulate into output block)
    then o = sigmoid(o + b2).
    """
    x = x_ref[...].astype(WEIGHT_DTYPE)                                   # (tile, 128) bf16
    for c in range(N_CHUNKS):                                             # static unroll (4)
        lo, hi = c * H_CHUNK, (c + 1) * H_CHUNK
        h = jnp.dot(x, w1_ref[:, lo:hi],
                    preferred_element_type=jnp.float32)                   # MXU, f32 acc
        h = jnp.maximum(h + b1_ref[:, lo:hi], 0.0)                        # bias + ReLU (VPU)
        y = jnp.dot(h.astype(WEIGHT_DTYPE), w2_ref[lo:hi, :],
                    preferred_element_type=jnp.float32)                   # MXU, f32 acc
        if c == 0:
            o_ref[...] = y
        else:
            o_ref[...] += y
    o_ref[...] = jax.nn.sigmoid(o_ref[...] + b2_ref[...]).astype(o_ref.dtype)


def _round_up(n, m):
    return ((n + m - 1) // m) * m


def _pick_tile(b_pad8):
    """Batch tile selection (b_pad8 is the 8-aligned batch).

    <=256 rows : single full-batch tile (tiny kernel; no padding waste).
    <=1024     : tile=256 -> >=2 grid steps so both v7x TCs get work, and
                 M=256 keeps the 256-wide MXU on v6e/v7x streaming.
    larger     : tile=512 (still >=2 steps, ~5-6 MiB VMEM footprint).
    For a serving setup with highly variable B, bucket b_pad8 to a small set
    of sizes before calling to bound Mosaic recompiles.
    """
    if b_pad8 <= 256:
        return b_pad8
    if b_pad8 <= 1024:
        return 256
    return 512


def net1_forward(x, w1_p, b1_p, w2_p, b2_p):
    """x: (B, D_IN) f32; w1_p: (D_IN, HIDDEN_PAD) bf16; b1_p: (1, HIDDEN_PAD) f32;
    w2_p: (HIDDEN_PAD, F) bf16; b2_p: (1, F) f32.  Returns (B, F) f32."""
    B, d_in = x.shape
    hidden = w1_p.shape[1]
    d_out = w2_p.shape[1]

    # Only align the batch to the 8-row sublane boundary; partial trailing
    # grid blocks are masked by the pipeline, so no full-tile padding.
    b_pad8 = _round_up(B, 8)
    if b_pad8 != B:
        x = jnp.pad(x, ((0, b_pad8 - B), (0, 0)))

    tile = _pick_tile(b_pad8)
    grid = (pl.cdiv(b_pad8, tile),)

    out = pl.pallas_call(
        net1_kernel,
        out_shape=jax.ShapeDtypeStruct((b_pad8, d_out), DTYPE),
        grid_spec=pltpu.PrefetchScalarGridSpec(
            num_scalar_prefetch=0,
            grid=grid,
            in_specs=[
                # x: tiled over batch
                pl.BlockSpec((tile, d_in), lambda i: (i, 0)),
                # weights / biases: full arrays, constant index map -> resident
                pl.BlockSpec((d_in, hidden), lambda i: (0, 0)),
                pl.BlockSpec((1, hidden), lambda i: (0, 0)),
                pl.BlockSpec((hidden, d_out), lambda i: (0, 0)),
                pl.BlockSpec((1, d_out), lambda i: (0, 0)),
            ],
            out_specs=pl.BlockSpec((tile, d_out), lambda i: (i, 0)),
        ),
        compiler_params=pltpu.CompilerParams(
            dimension_semantics=("parallel",),       # batch axis shards across TCs
            vmem_limit_bytes=32 << 20,               # fits every chip incl. v7x (64 MiB/TC)
        ),
    )(x, w1_p, b1_p, w2_p, b2_p)

    return out[:B] if b_pad8 != B else out


def init_params(key):
    """Deterministic f32 init mimicking nn.Linear's U(-1/sqrt(fan_in), 1/sqrt(fan_in))."""
    k1, k2, k3, k4 = jax.random.split(key, 4)
    bound1 = 1.0 / jnp.sqrt(D_IN)
    bound2 = 1.0 / jnp.sqrt(HIDDEN)
    # Stored pre-transposed: (in, out)
    w1_t = jax.random.uniform(k1, (D_IN, HIDDEN), DTYPE, -bound1, bound1)
    b1 = jax.random.uniform(k2, (1, HIDDEN), DTYPE, -bound1, bound1)
    w2_t = jax.random.uniform(k3, (HIDDEN, FEATURE_VECTOR_LENGTH), DTYPE, -bound2, bound2)
    b2 = jax.random.uniform(k4, (1, FEATURE_VECTOR_LENGTH), DTYPE, -bound2, bound2)
    return w1_t, b1, w2_t, b2


def pack_params(w1_t, b1, w2_t, b2):
    """Zero-pad hidden 2000 -> 2048 and cast matmul weights to bf16 (padding is exact)."""
    pad_h = HIDDEN_PAD - HIDDEN
    w1_p = jnp.pad(w1_t, ((0, 0), (0, pad_h))).astype(WEIGHT_DTYPE)
    b1_p = jnp.pad(b1, ((0, 0), (0, pad_h))).astype(jnp.float32)
    w2_p = jnp.pad(w2_t, ((0, pad_h), (0, 0))).astype(WEIGHT_DTYPE)
    b2_p = b2.astype(jnp.float32)
    return w1_p, b1_p, w2_p, b2_p


def net1_reference(x, w1_t, b1, w2_t, b2):
    """Pure-JAX f32 reference of the PyTorch forward (unpadded, full precision)."""
    h = jnp.maximum(x @ w1_t + b1, 0.0)
    return jax.nn.sigmoid(h @ w2_t + b2)


if __name__ == "__main__":
    key = jax.random.PRNGKey(0)
    kx, kp = jax.random.split(key)

    w1_t, b1, w2_t, b2 = init_params(kp)
    params = pack_params(w1_t, b1, w2_t, b2)

    # B=10  : ragged -> padded to 16 rows, single tile, sliced back to 10.
    # B=200 : 8-aligned, single exact full-batch tile.
    # B=328 : two 256-row grid steps with a masked partial trailing block
    #         (exercises the multi-step / no-full-tile-padding path).
    for B in (10, 200, 328):
        kx, sub = jax.random.split(kx)
        x = jax.random.normal(sub, (B, D_IN), dtype=DTYPE)

        out = jax.block_until_ready(net1_forward(x, *params))
        ref = net1_reference(x, w1_t, b1, w2_t, b2)

        assert out.shape == (B, FEATURE_VECTOR_LENGTH)
        # bf16 MXU operands (f32 accumulate) vs f32 reference -> loosened tolerance.
        assert jnp.allclose(out, ref, atol=2e-2, rtol=2e-2), f"mismatch vs reference (B={B})"

    print("KERNEL_OK")
</pallas_src>

<mosaic_0001>
module attributes {stable_mosaic.version = 11 : i64} {
  func.func @net1_kernel(%arg0: i32, %arg1: memref<16x128xf32, #tpu.memory_space<vmem>>, %arg2: memref<128x2048xbf16, #tpu.memory_space<vmem>>, %arg3: memref<1x2048xf32, #tpu.memory_space<vmem>>, %arg4: memref<2048x256xbf16, #tpu.memory_space<vmem>>, %arg5: memref<1x256xf32, #tpu.memory_space<vmem>>, %arg6: memref<16x256xf32, #tpu.memory_space<vmem>>) attributes {dimension_semantics = [#tpu.dimension_semantics<parallel>], iteration_bounds = array<i64: 1>, scalar_prefetch = 0 : i64, scratch_operands = 0 : i64, tpu.core_type = #tpu.core_type<tc>, window_params = [{transform_indices = @transform_0, window_bounds = array<i64: 16, 128>}, {pipeline_mode = #tpu.pipeline_mode<synchronous>, transform_indices = @transform_1, window_bounds = array<i64: 128, 2048>}, {pipeline_mode = #tpu.pipeline_mode<synchronous>, transform_indices = @transform_2, window_bounds = array<i64: 1, 2048>}, {pipeline_mode = #tpu.pipeline_mode<synchronous>, transform_indices = @transform_3, window_bounds = array<i64: 2048, 256>}, {pipeline_mode = #tpu.pipeline_mode<synchronous>, transform_indices = @transform_4, window_bounds = array<i64: 1, 256>}, {transform_indices = @transform_5, window_bounds = array<i64: 16, 256>}]} {
    %c0 = arith.constant 0 : index
    %c0_0 = arith.constant 0 : index
    %0 = vector.load %arg1[%c0, %c0_0] : memref<16x128xf32, #tpu.memory_space<vmem>>, vector<16x128xf32>
    %1 = arith.truncf %0 : vector<16x128xf32> to vector<16x128xbf16>
    %c0_1 = arith.constant 0 : index
    %c0_2 = arith.constant 0 : index
    %2 = vector.load %arg2[%c0_1, %c0_2] : memref<128x2048xbf16, #tpu.memory_space<vmem>>, vector<128x512xbf16>
    %cst = arith.constant dense<0.000000e+00> : vector<16x512xf32>
    %3 = tpu.matmul %1, %2, %cst {dimension_numbers = #tpu.dot_dimension_numbers<[1], [0], [0], [1], [0, 0, 1, 1], [], []>} : vector<16x128xbf16>, vector<128x512xbf16>, vector<16x512xf32> -> vector<16x512xf32>
    %c0_3 = arith.constant 0 : index
    %c0_4 = arith.constant 0 : index
    %4 = vector.load %arg3[%c0_3, %c0_4] : memref<1x2048xf32, #tpu.memory_space<vmem>>, vector<1x512xf32>
    %5 = vector.broadcast %4 : vector<1x512xf32> to vector<16x512xf32>
    %6 = arith.addf %3, %5 : vector<16x512xf32>
    %cst_5 = arith.constant 0.000000e+00 : f32
    %7 = vector.broadcast %cst_5 : f32 to vector<16x512xf32>
    %8 = arith.maximumf %6, %7 : vector<16x512xf32>
    %9 = arith.truncf %8 : vector<16x512xf32> to vector<16x512xbf16>
    %c0_6 = arith.constant 0 : index
    %c0_7 = arith.constant 0 : index
    %10 = vector.load %arg4[%c0_6, %c0_7] : memref<2048x256xbf16, #tpu.memory_space<vmem>>, vector<512x256xbf16>
    %cst_8 = arith.constant dense<0.000000e+00> : vector<16x256xf32>
    %11 = tpu.matmul %9, %10, %cst_8 {dimension_numbers = #tpu.dot_dimension_numbers<[1], [0], [0], [1], [0, 0, 1, 1], [], []>} : vector<16x512xbf16>, vector<512x256xbf16>, vector<16x256xf32> -> vector<16x256xf32>
    %c0_9 = arith.constant 0 : index
    %c0_10 = arith.constant 0 : index
    %12 = vector.load %arg6[%c0_9, %c0_10] : memref<16x256xf32, #tpu.memory_space<vmem>>, vector<16x256xf32>
    tpu.vector_store %arg6[%c0_9, %c0_10], %11 {strides = array<i32>} : memref<16x256xf32, #tpu.memory_space<vmem>>, vector<16x256xf32>,
    %c0_11 = arith.constant 0 : index
    %c512 = arith.constant 512 : index
    %13 = vector.load %arg2[%c0_11, %c512] : memref<128x2048xbf16, #tpu.memory_space<vmem>>, vector<128x512xbf16>
    %cst_12 = arith.constant dense<0.000000e+00> : vector<16x512xf32>
    %14 = tpu.matmul %1, %13, %cst_12 {dimension_numbers = #tpu.dot_dimension_numbers<[1], [0], [0], [1], [0, 0, 1, 1], [], []>} : vector<16x128xbf16>, vector<128x512xbf16>, vector<16x512xf32> -> vector<16x512xf32>
    %c0_13 = arith.constant 0 : index
    %c512_14 = arith.constant 512 : index
    %15 = vector.load %arg3[%c0_13, %c512_14] : memref<1x2048xf32, #tpu.memory_space<vmem>>, vector<1x512xf32>
    %16 = vector.broadcast %15 : vector<1x512xf32> to vector<16x512xf32>
    %17 = arith.addf %14, %16 : vector<16x512xf32>
    %cst_15 = arith.constant 0.000000e+00 : f32
    %18 = vector.broadcast %cst_15 : f32 to vector<16x512xf32>
    %19 = arith.maximumf %17, %18 : vector<16x512xf32>
    %20 = arith.truncf %19 : vector<16x512xf32> to vector<16x512xbf16>
    %c512_16 = arith.constant 512 : index
    %c0_17 = arith.constant 0 : index
    %21 = vector.load %arg4[%c512_16, %c0_17] : memref<2048x256xbf16, #tpu.memory_space<vmem>>, vector<512x256xbf16>
    %cst_18 = arith.constant dense<0.000000e+00> : vector<16x256xf32>
    %22 = tpu.matmul %20, %21, %cst_18 {dimension_numbers = #tpu.dot_dimension_numbers<[1], [0], [0], [1], [0, 0, 1, 1], [], []>} : vector<16x512xbf16>, vector<512x256xbf16>, vector<16x256xf32> -> vector<16x256xf32>
    %c0_19 = arith.constant 0 : index
    %c0_20 = arith.constant 0 : index
    %23 = vector.load %arg6[%c0_19, %c0_20] : memref<16x256xf32, #tpu.memory_space<vmem>>, vector<16x256xf32>
    %24 = arith.addf %23, %22 : vector<16x256xf32>
    %c0_21 = arith.constant 0 : index
    %c0_22 = arith.constant 0 : index
    %25 = vector.load %arg6[%c0_21, %c0_22] : memref<16x256xf32, #tpu.memory_space<vmem>>, vector<16x256xf32>
    tpu.vector_store %arg6[%c0_21, %c0_22], %24 {strides = array<i32>} : memref<16x256xf32, #tpu.memory_space<vmem>>, vector<16x256xf32>,
    %c0_23 = arith.constant 0 : index
    %c1024 = arith.constant 1024 : index
    %26 = vector.load %arg2[%c0_23, %c1024] : memref<128x2048xbf16, #tpu.memory_space<vmem>>, vector<128x512xbf16>
    %cst_24 = arith.constant dense<0.000000e+00> : vector<16x512xf32>
    %27 = tpu.matmul %1, %26, %cst_24 {dimension_numbers = #tpu.dot_dimension_numbers<[1], [0], [0], [1], [0, 0, 1, 1], [], []>} : vector<16x128xbf16>, vector<128x512xbf16>, vector<16x512xf32> -> vector<16x512xf32>
    %c0_25 = arith.constant 0 : index
    %c1024_26 = arith.constant 1024 : index
    %28 = vector.load %arg3[%c0_25, %c1024_26] : memref<1x2048xf32, #tpu.memory_space<vmem>>, vector<1x512xf32>
    %29 = vector.broadcast %28 : vector<1x512xf32> to vector<16x512xf32>
    %30 = arith.addf %27, %29 : vector<16x512xf32>
    %cst_27 = arith.constant 0.000000e+00 : f32
    %31 = vector.broadcast %cst_27 : f32 to vector<16x512xf32>
    %32 = arith.maximumf %30, %31 : vector<16x512xf32>
    %33 = arith.truncf %32 : vector<16x512xf32> to vector<16x512xbf16>
    %c1024_28 = arith.constant 1024 : index
    %c0_29 = arith.constant 0 : index
    %34 = vector.load %arg4[%c1024_28, %c0_29] : memref<2048x256xbf16, #tpu.memory_space<vmem>>, vector<512x256xbf16>
    %cst_30 = arith.constant dense<0.000000e+00> : vector<16x256xf32>
    %35 = tpu.matmul %33, %34, %cst_30 {dimension_numbers = #tpu.dot_dimension_numbers<[1], [0], [0], [1], [0, 0, 1, 1], [], []>} : vector<16x512xbf16>, vector<512x256xbf16>, vector<16x256xf32> -> vector<16x256xf32>
    %c0_31 = arith.constant 0 : index
    %c0_32 = arith.constant 0 : index
    %36 = vector.load %arg6[%c0_31, %c0_32] : memref<16x256xf32, #tpu.memory_space<vmem>>, vector<16x256xf32>
    %37 = arith.addf %36, %35 : vector<16x256xf32>
    %c0_33 = arith.constant 0 : index
    %c0_34 = arith.constant 0 : index
    %38 = vector.load %arg6[%c0_33, %c0_34] : memref<16x256xf32, #tpu.memory_space<vmem>>, vector<16x256xf32>
    tpu.vector_store %arg6[%c0_33, %c0_34], %37 {strides = array<i32>} : memref<16x256xf32, #tpu.memory_space<vmem>>, vector<16x256xf32>,
    %c0_35 = arith.constant 0 : index
    %c1536 = arith.constant 1536 : index
    %39 = vector.load %arg2[%c0_35, %c1536] : memref<128x2048xbf16, #tpu.memory_space<vmem>>, vector<128x512xbf16>
    %cst_36 = arith.constant dense<0.000000e+00> : vector<16x512xf32>
    %40 = tpu.matmul %1, %39, %cst_36 {dimension_numbers = #tpu.dot_dimension_numbers<[1], [0], [0], [1], [0, 0, 1, 1], [], []>} : vector<16x128xbf16>, vector<128x512xbf16>, vector<16x512xf32> -> vector<16x512xf32>
    %c0_37 = arith.constant 0 : index
    %c1536_38 = arith.constant 1536 : index
    %41 = vector.load %arg3[%c0_37, %c1536_38] : memref<1x2048xf32, #tpu.memory_space<vmem>>, vector<1x512xf32>
    %42 = vector.broadcast %41 : vector<1x512xf32> to vector<16x512xf32>
    %43 = arith.addf %40, %42 : vector<16x512xf32>
    %cst_39 = arith.constant 0.000000e+00 : f32
    %44 = vector.broadcast %cst_39 : f32 to vector<16x512xf32>
    %45 = arith.maximumf %43, %44 : vector<16x512xf32>
    %46 = arith.truncf %45 : vector<16x512xf32> to vector<16x512xbf16>
    %c1536_40 = arith.constant 1536 : index
    %c0_41 = arith.constant 0 : index
    %47 = vector.load %arg4[%c1536_40, %c0_41] : memref<2048x256xbf16, #tpu.memory_space<vmem>>, vector<512x256xbf16>
    %cst_42 = arith.constant dense<0.000000e+00> : vector<16x256xf32>
    %48 = tpu.matmul %46, %47, %cst_42 {dimension_numbers = #tpu.dot_dimension_numbers<[1], [0], [0], [1], [0, 0, 1, 1], [], []>} : vector<16x512xbf16>, vector<512x256xbf16>, vector<16x256xf32> -> vector<16x256xf32>
    %c0_43 = arith.constant 0 : index
    %c0_44 = arith.constant 0 : index
    %49 = vector.load %arg6[%c0_43, %c0_44] : memref<16x256xf32, #tpu.memory_space<vmem>>, vector<16x256xf32>
    %50 = arith.addf %49, %48 : vector<16x256xf32>
    %c0_45 = arith.constant 0 : index
    %c0_46 = arith.constant 0 : index
    %51 = vector.load %arg6[%c0_45, %c0_46] : memref<16x256xf32, #tpu.memory_space<vmem>>, vector<16x256xf32>
    tpu.vector_store %arg6[%c0_45, %c0_46], %50 {strides = array<i32>} : memref<16x256xf32, #tpu.memory_space<vmem>>, vector<16x256xf32>,
    %c0_47 = arith.constant 0 : index
    %c0_48 = arith.constant 0 : index
    %52 = vector.load %arg6[%c0_47, %c0_48] : memref<16x256xf32, #tpu.memory_space<vmem>>, vector<16x256xf32>
    %c0_49 = arith.constant 0 : index
    %c0_50 = arith.constant 0 : index
    %53 = vector.load %arg5[%c0_49, %c0_50] : memref<1x256xf32, #tpu.memory_space<vmem>>, vector<1x256xf32>
    %54 = vector.broadcast %53 : vector<1x256xf32> to vector<16x256xf32>
    %55 = arith.addf %52, %54 : vector<16x256xf32>
    %56 = arith.negf %55 : vector<16x256xf32>
    %57 = math.exp %56 : vector<16x256xf32>
    %cst_51 = arith.constant 1.000000e+00 : f32
    %58 = vector.broadcast %cst_51 : f32 to vector<16x256xf32>
    %59 = arith.addf %58, %57 : vector<16x256xf32>
    %60 = arith.divf %58, %59 : vector<16x256xf32>
    %c0_52 = arith.constant 0 : index
    %c0_53 = arith.constant 0 : index
    %61 = vector.load %arg6[%c0_52, %c0_53] : memref<16x256xf32, #tpu.memory_space<vmem>>, vector<16x256xf32>
    tpu.vector_store %arg6[%c0_52, %c0_53], %60 {strides = array<i32>} : memref<16x256xf32, #tpu.memory_space<vmem>>, vector<16x256xf32>,
    return
  }
  func.func @transform_0(%arg0: i32) -> (i32, i32) {
    %c0_i32 = arith.constant 0 : i32
    %c0_i32_0 = arith.constant 0 : i32
    return %arg0, %c0_i32 : i32, i32
  }
  func.func @transform_1(%arg0: i32) -> (i32, i32) {
    %c0_i32 = arith.constant 0 : i32
    %c0_i32_0 = arith.constant 0 : i32
    %c0_i32_1 = arith.constant 0 : i32
    return %c0_i32, %c0_i32_0 : i32, i32
  }
  func.func @transform_2(%arg0: i32) -> (i32, i32) {
    %c0_i32 = arith.constant 0 : i32
    %c0_i32_0 = arith.constant 0 : i32
    %c0_i32_1 = arith.constant 0 : i32
    return %c0_i32, %c0_i32_0 : i32, i32
  }
  func.func @transform_3(%arg0: i32) -> (i32, i32) {
    %c0_i32 = arith.constant 0 : i32
    %c0_i32_0 = arith.constant 0 : i32
    %c0_i32_1 = arith.constant 0 : i32
    return %c0_i32, %c0_i32_0 : i32, i32
  }
  func.func @transform_4(%arg0: i32) -> (i32, i32) {
    %c0_i32 = arith.constant 0 : i32
    %c0_i32_0 = arith.constant 0 : i32
    %c0_i32_1 = arith.constant 0 : i32
    return %c0_i32, %c0_i32_0 : i32, i32
  }
  func.func @transform_5(%arg0: i32) -> (i32, i32) {
    %c0_i32 = arith.constant 0 : i32
    %c0_i32_0 = arith.constant 0 : i32
    return %arg0, %c0_i32 : i32, i32
  }
}

</mosaic_0001>

<llo_original>
// kernel: tpu_custom_call.1
$region0: #{tpu_custom_call.1}
  #allocation0 [shape = 'u32[]', space=smem, size = 0x4, offset = 0x4, fixed_abs, tag = 'smem constant byte address 0x4 - core index']
  #allocation1 [shape = 'u32[144,128]{1,0:T(1,128)}', space=vmem, size = 0x12000, scoped, tag = 'internal scratch']
  %s0 = inlined_call_operand.hbm [shape: f32[16,128], index: 0, kind: input, shape index: {}]
  %s1 = inlined_call_operand.hbm [shape: bf16[128,2048], index: 1, kind: input, shape index: {}]
  %s2 = inlined_call_operand.hbm [shape: f32[1,2048], index: 2, kind: input, shape index: {}]
  %s3 = inlined_call_operand.hbm [shape: bf16[2048,256], index: 3, kind: input, shape index: {}]
  %s4 = inlined_call_operand.vmem [shape: f32[1,256], index: 4, kind: input, shape index: {}]
  %s5 = inlined_call_operand.hbm [shape: f32[16,256], index: 5, kind: output, shape index: {}]
  %s6 = sld [smem:[#allocation0]]
  $region46: #{tpu_custom_call.1} parent=0
    _
  %s8 = ssub.s32 1, %s6
  %s9 = scalar_select 0, %s8, %s6
  $region1: #{tpu_custom_call.1} parent=0
    #allocation2 [shape = 'u8[8192]{0}', space=vmem, size = 0x2000, scoped, tag = 'input window, operand 0, single buffered']
    #allocation3 [shape = 's32[1]{0}', space=sflag, size = 0x4, scoped, tag = 'scoped memory for tpu_custom_call.1']
    #allocation4 [shape = 's32[1]{0}', space=sflag, size = 0x4, scoped, tag = 'scoped memory for tpu_custom_call.1']
    #allocation5 [shape = 'u8[524288]{0}', space=vmem, size = 0x80000, scoped, tag = 'input window, operand 1, single buffered']
    #allocation6 [shape = 's32[1]{0}', space=sflag, size = 0x4, scoped, tag = 'scoped memory for tpu_custom_call.1']
    #allocation7 [shape = 'u8[8192]{0}', space=vmem, size = 0x2000, scoped, tag = 'input window, operand 2, single buffered']
    #allocation8 [shape = 'u8[1048576]{0}', space=vmem, size = 0x100000, scoped, tag = 'input window, operand 3, single buffered']
    #allocation9 [shape = 's32[1]{0}', space=sflag, size = 0x4, scoped, tag = 'scoped memory for tpu_custom_call.1']
    #allocation10 [shape = 'u8[16384]{0}', space=vmem, size = 0x4000, scoped, tag = 'output window, operand 0, single buffered']
    %10 = vsyncpa [#allocation3], 0
    %11 = vsyncpa [#allocation6], 0
    %12 = vsyncpa [#allocation9], 0
    %13 = vsyncpa [#allocation4], 0
    // Predicated region
    $region2: #{tpu_custom_call.1} parent=1 // pred_check
      _
    $region3: #{tpu_custom_call.1} parent=1 // pred_check_branch
      %15 = sbr.rel (0) target = $region5
    $region4: #{tpu_custom_call.1} parent=1 // pred_region
      %s17 = ssub.s32 256, 256
      %18 = vsyncadd [#allocation3], %s17
      %s19 = sshll.u32 [#allocation2], 4
      %s20 = int_to_ptr.vmem [resolvable:$true] %s19
      %25 = dma.hbm_to_vmem [thread:$0]  %s0, 256, %s20, [#allocation3], 128, 128, 8
    $region5: #{tpu_custom_call.1} parent=1 // pred_fallthru
      _
    // Predicated region
    $region6: #{tpu_custom_call.1} parent=1 // pred_check
      _
    $region7: #{tpu_custom_call.1} parent=1 // pred_check_branch
      %27 = sbr.rel (0) target = $region9
    $region8: #{tpu_custom_call.1} parent=1 // pred_region
      %s29 = ssub.s32 16384, 16384
      %30 = vsyncadd [#allocation6], %s29
      %s31 = sshll.u32 [#allocation5], 4
      %s32 = int_to_ptr.vmem [resolvable:$true] %s31
      %37 = dma.hbm_to_vmem [thread:$0]  %s1, 16384, %s32, [#allocation6], 1024, 1024, 64
    $region9: #{tpu_custom_call.1} parent=1 // pred_fallthru
      _
    // Predicated region
    $region10: #{tpu_custom_call.1} parent=1 // pred_check
      _
    $region11: #{tpu_custom_call.1} parent=1 // pred_check_branch
      %39 = sbr.rel (0) target = $region13
    $region12: #{tpu_custom_call.1} parent=1 // pred_region
      %s41 = ssub.s32 256, 256
      %42 = vsyncadd [#allocation6], %s41
      %s44 = sshll.u32 [#allocation7], 4
      %s45 = int_to_ptr.vmem [resolvable:$true] %s44
      %47 = dma.hbm_to_vmem [thread:$0]  %s2, 256, %s45, [#allocation6]
    $region13: #{tpu_custom_call.1} parent=1 // pred_fallthru
      _
    // Predicated region
    $region14: #{tpu_custom_call.1} parent=1 // pred_check
      _
    $region15: #{tpu_custom_call.1} parent=1 // pred_check_branch
      %49 = sbr.rel (0) target = $region17
    $region16: #{tpu_custom_call.1} parent=1 // pred_region
      %s51 = ssub.s32 32768, 32768
      %52 = vsyncadd [#allocation9], %s51
      %s53 = sshll.u32 [#allocation8], 4
      %s54 = int_to_ptr.vmem [resolvable:$true] %s53
      %59 = dma.hbm_to_vmem [thread:$0]  %s3, 32768, %s54, [#allocation9], 128, 128, 8
    $region17: #{tpu_custom_call.1} parent=1 // pred_fallthru
      _
    // Predicated region
    $region18: #{tpu_custom_call.1} parent=1 // pred_check
      _
    $region19: #{tpu_custom_call.1} parent=1 // pred_check_branch
      %61 = sbr.rel (0) target = $region21
    $region20: #{tpu_custom_call.1} parent=1 // pred_region
      _
    $region21: #{tpu_custom_call.1} parent=1 // pred_fallthru
      _
    // Predicated region
    $region22: #{tpu_custom_call.1} parent=1 // pred_check
      _
    $region23: #{tpu_custom_call.1} parent=1 // pred_check_branch
      %63 = sbr.rel (0) target = $region25
    $region24: #{tpu_custom_call.1} parent=1 // pred_region
      %64 = dma.done [#allocation3], 256
    $region25: #{tpu_custom_call.1} parent=1 // pred_fallthru
      _
    // Predicated region
    $region26: #{tpu_custom_call.1} parent=1 // pred_check
      _
    $region27: #{tpu_custom_call.1} parent=1 // pred_check_branch
      %66 = sbr.rel (0) target = $region29
    $region28: #{tpu_custom_call.1} parent=1 // pred_region
      %67 = dma.done [#allocation6], 16384
    $region29: #{tpu_custom_call.1} parent=1 // pred_fallthru
      _
    // Predicated region
    $region30: #{tpu_custom_call.1} parent=1 // pred_check
      _
    $region31: #{tpu_custom_call.1} parent=1 // pred_check_branch
      %69 = sbr.rel (0) target = $region33
    $region32: #{tpu_custom_call.1} parent=1 // pred_region
      %70 = dma.done [#allocation6], 256
    $region33: #{tpu_custom_call.1} parent=1 // pred_fallthru
      _
    // Predicated region
    $region34: #{tpu_custom_call.1} parent=1 // pred_check
      _
    $region35: #{tpu_custom_call.1} parent=1 // pred_check_branch
      %72 = sbr.rel (0) target = $region37
    $region36: #{tpu_custom_call.1} parent=1 // pred_region
      %73 = dma.done [#allocation9], 32768
    $region37: #{tpu_custom_call.1} parent=1 // pred_fallthru
      _
    %v75 = vld [vmem:[#allocation2] sm:$0xff]
    %v76 = vld [vmem:[#allocation2 + $0x8] sm:$0xff]
    %v77 = vpack.c.bf16 %v76, %v75
    %v78 = vld [vmem:[#allocation5] sm:$0xff]
    %v79 = vld [vmem:[#allocation5 + $0x8] sm:$0xff]
    %v80 = vld [vmem:[#allocation5 + $0x40] sm:$0xff]
    %v81 = vld [vmem:[#allocation5 + $0x48] sm:$0xff]
    %v82 = vld [vmem:[#allocation5 + $0x80] sm:$0xff]
    %v83 = vld [vmem:[#allocation5 + $0x88] sm:$0xff]
    %v84 = vld [vmem:[#allocation5 + $0xc0] sm:$0xff]
    %v85 = vld [vmem:[#allocation5 + $0xc8] sm:$0xff]
    %v86 = vld [vmem:[#allocation5 + $0x100] sm:$0xff]
    %v87 = vld [vmem:[#allocation5 + $0x108] sm:$0xff]
    %v88 = vld [vmem:[#allocation5 + $0x140] sm:$0xff]
    %v89 = vld [vmem:[#allocation5 + $0x148] sm:$0xff]
    %v90 = vld [vmem:[#allocation5 + $0x180] sm:$0xff]
    %v91 = vld [vmem:[#allocation5 + $0x188] sm:$0xff]
    %v92 = vld [vmem:[#allocation5 + $0x1c0] sm:$0xff]
    %v93 = vld [vmem:[#allocation5 + $0x1c8] sm:$0xff]
    %v94 = vld [vmem:[#allocation5 + $0x200] sm:$0xff]
    %v95 = vld [vmem:[#allocation5 + $0x208] sm:$0xff]
    %v96 = vld [vmem:[#allocation5 + $0x240] sm:$0xff]
    %v97 = vld [vmem:[#allocation5 + $0x248] sm:$0xff]
    %v98 = vld [vmem:[#allocation5 + $0x280] sm:$0xff]
    %v99 = vld [vmem:[#allocation5 + $0x288] sm:$0xff]
    %v100 = vld [vmem:[#allocation5 + $0x2c0] sm:$0xff]
    %v101 = vld [vmem:[#allocation5 + $0x2c8] sm:$0xff]
    %v102 = vld [vmem:[#allocation5 + $0x300] sm:$0xff]
    %v103 = vld [vmem:[#allocation5 + $0x308] sm:$0xff]
    %v104 = vld [vmem:[#allocation5 + $0x340] sm:$0xff]
    %v105 = vld [vmem:[#allocation5 + $0x348] sm:$0xff]
    %v106 = vld [vmem:[#allocation5 + $0x380] sm:$0xff]
    %v107 = vld [vmem:[#allocation5 + $0x388] sm:$0xff]
    %v108 = vld [vmem:[#allocation5 + $0x3c0] sm:$0xff]
    %v109 = vld [vmem:[#allocation5 + $0x3c8] sm:$0xff]
    %v110 = vld [vmem:[#allocation7] sm:$0xf]
    %v112 = vlaneseq
    %v113 = vshrl.u32 %v112, 7
    %v114 = vsub.s32 0, %v113
    %v115 = vrot.slane %v110, %v114
    %v116 = vlaneseq
    %v117 = vshrl.u32 %v116, 7
    %v118 = vsub.s32 1, %v117
    %v119 = vrot.slane %v110, %v118
    %v120 = vlaneseq
    %v121 = vshrl.u32 %v120, 7
    %v122 = vsub.s32 2, %v121
    %v123 = vrot.slane %v110, %v122
    %v124 = vlaneseq
    %v125 = vshrl.u32 %v124, 7
    %v126 = vsub.s32 3, %v125
    %v127 = vrot.slane %v110, %v126
    %v164 = vunpack.c.l.b16 %v78
    %v165 = vunpack.c.h.b16 %v78
    %v166 = vunpack.c.l.b16 %v79
    %v167 = vunpack.c.h.b16 %v79
    %v168 = vunpack.c.l.b16 %v80
    %v169 = vunpack.c.h.b16 %v80
    %v170 = vunpack.c.l.b16 %v81
    %v171 = vunpack.c.h.b16 %v81
    %v172 = vunpack.c.l.b16 %v82
    %v173 = vunpack.c.h.b16 %v82
    %v174 = vunpack.c.l.b16 %v83
    %v175 = vunpack.c.h.b16 %v83
    %v176 = vunpack.c.l.b16 %v84
    %v177 = vunpack.c.h.b16 %v84
    %v178 = vunpack.c.l.b16 %v85
    %v179 = vunpack.c.h.b16 %v85
    %v180 = vunpack.c.l.b16 %v86
    %v181 = vunpack.c.h.b16 %v86
    %v182 = vunpack.c.l.b16 %v87
    %v183 = vunpack.c.h.b16 %v87
    %v184 = vunpack.c.l.b16 %v88
    %v185 = vunpack.c.h.b16 %v88
    %v186 = vunpack.c.l.b16 %v89
    %v187 = vunpack.c.h.b16 %v89
    %v188 = vunpack.c.l.b16 %v90
    %v189 = vunpack.c.h.b16 %v90
    %v190 = vunpack.c.l.b16 %v91
    %v191 = vunpack.c.h.b16 %v91
    %v192 = vunpack.c.l.b16 %v92
    %v193 = vunpack.c.h.b16 %v92
    %v194 = vunpack.c.l.b16 %v93
    %v195 = vunpack.c.h.b16 %v93
    %v196 = vunpack.c.l.b16 %v94
    %v197 = vunpack.c.h.b16 %v94
    %v198 = vunpack.c.l.b16 %v95
    %v199 = vunpack.c.h.b16 %v95
    %v200 = vunpack.c.l.b16 %v96
    %v201 = vunpack.c.h.b16 %v96
    %v202 = vunpack.c.l.b16 %v97
    %v203 = vunpack.c.h.b16 %v97
    %v204 = vunpack.c.l.b16 %v98
    %v205 = vunpack.c.h.b16 %v98
    %v206 = vunpack.c.l.b16 %v99
    %v207 = vunpack.c.h.b16 %v99
    %v208 = vunpack.c.l.b16 %v100
    %v209 = vunpack.c.h.b16 %v100
    %v210 = vunpack.c.l.b16 %v101
    %v211 = vunpack.c.h.b16 %v101
    %v212 = vunpack.c.l.b16 %v102
    %v213 = vunpack.c.h.b16 %v102
    %v214 = vunpack.c.l.b16 %v103
    %v215 = vunpack.c.h.b16 %v103
    %v216 = vunpack.c.l.b16 %v104
    %v217 = vunpack.c.h.b16 %v104
    %v218 = vunpack.c.l.b16 %v105
    %v219 = vunpack.c.h.b16 %v105
    %v220 = vunpack.c.l.b16 %v106
    %v221 = vunpack.c.h.b16 %v106
    %v222 = vunpack.c.l.b16 %v107
    %v223 = vunpack.c.h.b16 %v107
    %v224 = vunpack.c.l.b16 %v108
    %v225 = vunpack.c.h.b16 %v108
    %v226 = vunpack.c.l.b16 %v109
    %v227 = vunpack.c.h.b16 %v109
    %v228 = vpack.c.b16 %v168, %v164
    %v229 = vpack.c.b16 %v169, %v165
    %v230 = vpack.c.b16 %v170, %v166
    %v231 = vpack.c.b16 %v171, %v167
    %v232 = vpack.c.b16 %v176, %v172
    %v233 = vpack.c.b16 %v177, %v173
    %v234 = vpack.c.b16 %v178, %v174
    %v235 = vpack.c.b16 %v179, %v175
    %v236 = vpack.c.b16 %v184, %v180
    %v237 = vpack.c.b16 %v185, %v181
    %v238 = vpack.c.b16 %v186, %v182
    %v239 = vpack.c.b16 %v187, %v183
    %v240 = vpack.c.b16 %v192, %v188
    %v241 = vpack.c.b16 %v193, %v189
    %v242 = vpack.c.b16 %v194, %v190
    %v243 = vpack.c.b16 %v195, %v191
    %v244 = vpack.c.b16 %v200, %v196
    %v245 = vpack.c.b16 %v201, %v197
    %v246 = vpack.c.b16 %v202, %v198
    %v247 = vpack.c.b16 %v203, %v199
    %v248 = vpack.c.b16 %v208, %v204
    %v249 = vpack.c.b16 %v209, %v205
    %v250 = vpack.c.b16 %v210, %v206
    %v251 = vpack.c.b16 %v211, %v207
    %v252 = vpack.c.b16 %v216, %v212
    %v253 = vpack.c.b16 %v217, %v213
    %v254 = vpack.c.b16 %v218, %v214
    %v255 = vpack.c.b16 %v219, %v215
    %v256 = vpack.c.b16 %v224, %v220
    %v257 = vpack.c.b16 %v225, %v221
    %v258 = vpack.c.b16 %v226, %v222
    %v259 = vpack.c.b16 %v227, %v223
    %292 = vmatprep.subr.bf16.mxu0 %v229
    %293 = vmatpush1.bf16.msra.mxu0 %v228
    %294 = vmatprep.subr.bf16.mxu0 %v233
    %295 = vmatpush1.bf16.msra.mxu0 %v232
    %296 = vmatprep.subr.bf16.mxu0 %v237
    %297 = vmatpush1.bf16.msra.mxu0 %v236
    %298 = vmatprep.subr.bf16.mxu0 %v241
    %299 = vmatpush1.bf16.msra.mxu0 %v240
    %300 = vmatprep.subr.bf16.mxu0 %v245
    %301 = vmatpush1.bf16.msra.mxu0 %v244
    %302 = vmatprep.subr.bf16.mxu0 %v249
    %303 = vmatpush1.bf16.msra.mxu0 %v248
    %304 = vmatprep.subr.bf16.mxu0 %v253
    %305 = vmatpush1.bf16.msra.mxu0 %v252
    %306 = vmatprep.subr.bf16.mxu0 %v257
    %307 = vmatpush1.bf16.msra.mxu0 %v256
    %308 = vmatprep.subr.bf16.mxu0 0
    %309 = vmatpush1.bf16.msra.mxu0 0
    %310 = vmatprep.subr.bf16.mxu0 0
    %311 = vmatpush1.bf16.msra.mxu0 0
    %312 = vmatprep.subr.bf16.mxu0 0
    %313 = vmatpush1.bf16.msra.mxu0 0
    %314 = vmatprep.subr.bf16.mxu0 0
    %315 = vmatpush1.bf16.msra.mxu0 0
    %316 = vmatprep.subr.bf16.mxu0 0
    %317 = vmatpush1.bf16.msra.mxu0 0
    %318 = vmatprep.subr.bf16.mxu0 0
    %319 = vmatpush1.bf16.msra.mxu0 0
    %320 = vmatprep.subr.bf16.mxu0 0
    %321 = vmatpush1.bf16.msra.mxu0 0
    %322 = vmatprep.subr.bf16.mxu0 0
    %323 = vmatpush1.bf16.msra.mxu0 0
    %324 = vmatprep.mubr.bf16.mxu0 0
    %325 = vmatmul.mubr.bf16.gmra.mrb[0].mxu0 %v77
    %v326 = vpop.f32.mrb[0].mxu0
    %v327 = vadd.f32 %v115, %v326
    %v328 = vpop.f32.mrb[0].mxu0
    %v329 = vadd.f32 %v119, %v328
    %v330 = vpop.f32.mrb[0].mxu0
    %v331 = vadd.f32 %v115, %v330
    %v332 = vpop.f32.mrb[0].mxu0
    %v333 = vadd.f32 %v119, %v332
    %334 = vdwg.mxu0
    %335 = vmatprep.subr.bf16.mxu0 %v231
    %336 = vmatpush1.bf16.msra.mxu0 %v230
    %337 = vmatprep.subr.bf16.mxu0 %v235
    %338 = vmatpush1.bf16.msra.mxu0 %v234
    %339 = vmatprep.subr.bf16.mxu0 %v239
    %340 = vmatpush1.bf16.msra.mxu0 %v238
    %341 = vmatprep.subr.bf16.mxu0 %v243
    %342 = vmatpush1.bf16.msra.mxu0 %v242
    %343 = vmatprep.subr.bf16.mxu0 %v247
    %344 = vmatpush1.bf16.msra.mxu0 %v246
    %345 = vmatprep.subr.bf16.mxu0 %v251
    %346 = vmatpush1.bf16.msra.mxu0 %v250
    %347 = vmatprep.subr.bf16.mxu0 %v255
    %348 = vmatpush1.bf16.msra.mxu0 %v254
    %349 = vmatprep.subr.bf16.mxu0 %v259
    %350 = vmatpush1.bf16.msra.mxu0 %v258
    %351 = vmatprep.subr.bf16.mxu0 0
    %352 = vmatpush1.bf16.msra.mxu0 0
    %353 = vmatprep.subr.bf16.mxu0 0
    %354 = vmatpush1.bf16.msra.mxu0 0
    %355 = vmatprep.subr.bf16.mxu0 0
    %356 = vmatpush1.bf16.msra.mxu0 0
    %357 = vmatprep.subr.bf16.mxu0 0
    %358 = vmatpush1.bf16.msra.mxu0 0
    %359 = vmatprep.subr.bf16.mxu0 0
    %360 = vmatpush1.bf16.msra.mxu0 0
    %361 = vmatprep.subr.bf16.mxu0 0
    %362 = vmatpush1.bf16.msra.mxu0 0
    %363 = vmatprep.subr.bf16.mxu0 0
    %364 = vmatpush1.bf16.msra.mxu0 0
    %365 = vmatprep.subr.bf16.mxu0 0
    %366 = vmatpush1.bf16.msra.mxu0 0
    %367 = vmatprep.mubr.bf16.mxu0 0
    %368 = vmatmul.mubr.bf16.gmra.mrb[0].mxu0 %v77
    %v369 = vpop.f32.mrb[0].mxu0
    %v370 = vadd.f32 %v123, %v369
    %v371 = vpop.f32.mrb[0].mxu0
    %v372 = vadd.f32 %v127, %v371
    %v373 = vpop.f32.mrb[0].mxu0
    %v374 = vadd.f32 %v123, %v373
    %v375 = vpop.f32.mrb[0].mxu0
    %v376 = vadd.f32 %v127, %v375
    %377 = vdwg.mxu0
    %v378 = vmax.f32 %v327, 0.0
    %v379 = vmax.f32 %v329, 0.0
    %v380 = vmax.f32 %v370, 0.0
    %v381 = vmax.f32 %v372, 0.0
    %v382 = vmax.f32 %v331, 0.0
    %v383 = vmax.f32 %v333, 0.0
    %v384 = vmax.f32 %v374, 0.0
    %v385 = vmax.f32 %v376, 0.0
    %v386 = vpack.c.bf16 %v382, %v378
    %v387 = vpack.c.bf16 %v383, %v379
    %v388 = vpack.c.bf16 %v384, %v380
    %v389 = vpack.c.bf16 %v385, %v381
    %v390 = vld [vmem:[#allocation8] sm:$0xff]
    %v391 = vld [vmem:[#allocation8 + $0x8] sm:$0xff]
    %v392 = vld [vmem:[#allocation8 + $0x10] sm:$0xff]
    %v393 = vld [vmem:[#allocation8 + $0x18] sm:$0xff]
    %v394 = vld [vmem:[#allocation8 + $0x20] sm:$0xff]
    %v395 = vld [vmem:[#allocation8 + $0x28] sm:$0xff]
    %v396 = vld [vmem:[#allocation8 + $0x30] sm:$0xff]
    %v397 = vld [vmem:[#allocation8 + $0x38] sm:$0xff]
    %v398 = vld [vmem:[#allocation8 + $0x40] sm:$0xff]
    %v399 = vld [vmem:[#allocation8 + $0x48] sm:$0xff]
    %v400 = vld [vmem:[#allocation8 + $0x50] sm:$0xff]
    %v401 = vld [vmem:[#allocation8 + $0x58] sm:$0xff]
    %v402 = vld [vmem:[#allocation8 + $0x60] sm:$0xff]
    %v403 = vld [vmem:[#allocation8 + $0x68] sm:$0xff]
    %v404 = vld [vmem:[#allocation8 + $0x70] sm:$0xff]
    %v405 = vld [vmem:[#allocation8 + $0x78] sm:$0xff]
    %v406 = vld [vmem:[#allocation8 + $0x80] sm:$0xff]
    %v407 = vld [vmem:[#allocation8 + $0x88] sm:$0xff]
    %v408 = vld [vmem:[#allocation8 + $0x90] sm:$0xff]
    %v409 = vld [vmem:[#allocation8 + $0x98] sm:$0xff]
    %v410 = vld [vmem:[#allocation8 + $0xa0] sm:$0xff]
    %v411 = vld [vmem:[#allocation8 + $0xa8] sm:$0xff]
    %v412 = vld [vmem:[#allocation8 + $0xb0] sm:$0xff]
    %v413 = vld [vmem:[#allocation8 + $0xb8] sm:$0xff]
    %v414 = vld [vmem:[#allocation8 + $0xc0] sm:$0xff]
    %v415 = vld [vmem:[#allocation8 + $0xc8] sm:$0xff]
    %v416 = vld [vmem:[#allocation8 + $0xd0] sm:$0xff]
    %v417 = vld [vmem:[#allocation8 + $0xd8] sm:$0xff]
    %v418 = vld [vmem:[#allocation8 + $0xe0] sm:$0xff]
    %v419 = vld [vmem:[#allocation8 + $0xe8] sm:$0xff]
    %v420 = vld [vmem:[#allocation8 + $0xf0] sm:$0xff]
    %v421 = vld [vmem:[#allocation8 + $0xf8] sm:$0xff]
    %v422 = vld [vmem:[#allocation8 + $0x100] sm:$0xff]
    %v423 = vld [vmem:[#allocation8 + $0x108] sm:$0xff]
    %v424 = vld [vmem:[#allocation8 + $0x110] sm:$0xff]
    %v425 = vld [vmem:[#allocation8 + $0x118] sm:$0xff]
    %v426 = vld [vmem:[#allocation8 + $0x120] sm:$0xff]
    %v427 = vld [vmem:[#allocation8 + $0x128] sm:$0xff]
    %v428 = vld [vmem:[#allocation8 + $0x130] sm:$0xff]
    %v429 = vld [vmem:[#allocation8 + $0x138] sm:$0xff]
    %v430 = vld [vmem:[#allocation8 + $0x140] sm:$0xff]
    %v431 = vld [vmem:[#allocation8 + $0x148] sm:$0xff]
    %v432 = vld [vmem:[#allocation8 + $0x150] sm:$0xff]
    %v433 = vld [vmem:[#allocation8 + $0x158] sm:$0xff]
    %v434 = vld [vmem:[#allocation8 + $0x160] sm:$0xff]
    %v435 = vld [vmem:[#allocation8 + $0x168] sm:$0xff]
    %v436 = vld [vmem:[#allocation8 + $0x170] sm:$0xff]
    %v437 = vld [vmem:[#allocation8 + $0x178] sm:$0xff]
    %v438 = vld [vmem:[#allocation8 + $0x180] sm:$0xff]
    %v439 = vld [vmem:[#allocation8 + $0x188] sm:$0xff]
    %v440 = vld [vmem:[#allocation8 + $0x190] sm:$0xff]
    %v441 = vld [vmem:[#allocation8 + $0x198] sm:$0xff]
    %v442 = vld [vmem:[#allocation8 + $0x1a0] sm:$0xff]
    %v443 = vld [vmem:[#allocation8 + $0x1a8] sm:$0xff]
    %v444 = vld [vmem:[#allocation8 + $0x1b0] sm:$0xff]
    %v445 = vld [vmem:[#allocation8 + $0x1b8] sm:$0xff]
    %v446 = vld [vmem:[#allocation8 + $0x1c0] sm:$0xff]
    %v447 = vld [vmem:[#allocation8 + $0x1c8] sm:$0xff]
    %v448 = vld [vmem:[#allocation8 + $0x1d0] sm:$0xff]
    %v449 = vld [vmem:[#allocation8 + $0x1d8] sm:$0xff]
    %v450 = vld [vmem:[#allocation8 + $0x1e0] sm:$0xff]
    %v451 = vld [vmem:[#allocation8 + $0x1e8] sm:$0xff]
    %v452 = vld [vmem:[#allocation8 + $0x1f0] sm:$0xff]
    %v453 = vld [vmem:[#allocation8 + $0x1f8] sm:$0xff]
    %v518 = vunpack.c.l.b16 %v390
    %v519 = vunpack.c.h.b16 %v390
    %v520 = vunpack.c.l.b16 %v391
    %v521 = vunpack.c.h.b16 %v391
    %v522 = vunpack.c.l.b16 %v392
    %v523 = vunpack.c.h.b16 %v392
    %v524 = vunpack.c.l.b16 %v393
    %v525 = vunpack.c.h.b16 %v393
    %v526 = vunpack.c.l.b16 %v394
    %v527 = vunpack.c.h.b16 %v394
    %v528 = vunpack.c.l.b16 %v395
    %v529 = vunpack.c.h.b16 %v395
    %v530 = vunpack.c.l.b16 %v396
    %v531 = vunpack.c.h.b16 %v396
    %v532 = vunpack.c.l.b16 %v397
    %v533 = vunpack.c.h.b16 %v397
    %v534 = vunpack.c.l.b16 %v398
    %v535 = vunpack.c.h.b16 %v398
    %v536 = vunpack.c.l.b16 %v399
    %v537 = vunpack.c.h.b16 %v399
    %v538 = vunpack.c.l.b16 %v400
    %v539 = vunpack.c.h.b16 %v400
    %v540 = vunpack.c.l.b16 %v401
    %v541 = vunpack.c.h.b16 %v401
    %v542 = vunpack.c.l.b16 %v402
    %v543 = vunpack.c.h.b16 %v402
    %v544 = vunpack.c.l.b16 %v403
    %v545 = vunpack.c.h.b16 %v403
    %v546 = vunpack.c.l.b16 %v404
    %v547 = vunpack.c.h.b16 %v404
    %v548 = vunpack.c.l.b16 %v405
    %v549 = vunpack.c.h.b16 %v405
    %v550 = vunpack.c.l.b16 %v406
    %v551 = vunpack.c.h.b16 %v406
    %v552 = vunpack.c.l.b16 %v407
    %v553 = vunpack.c.h.b16 %v407
    %v554 = vunpack.c.l.b16 %v408
    %v555 = vunpack.c.h.b16 %v408
    %v556 = vunpack.c.l.b16 %v409
    %v557 = vunpack.c.h.b16 %v409
    %v558 = vunpack.c.l.b16 %v410
    %v559 = vunpack.c.h.b16 %v410
    %v560 = vunpack.c.l.b16 %v411
    %v561 = vunpack.c.h.b16 %v411
    %v562 = vunpack.c.l.b16 %v412
    %v563 = vunpack.c.h.b16 %v412
    %v564 = vunpack.c.l.b16 %v413
    %v565 = vunpack.c.h.b16 %v413
    %v566 = vunpack.c.l.b16 %v414
    %v567 = vunpack.c.h.b16 %v414
    %v568 = vunpack.c.l.b16 %v415
    %v569 = vunpack.c.h.b16 %v415
    %v570 = vunpack.c.l.b16 %v416
    %v571 = vunpack.c.h.b16 %v416
    %v572 = vunpack.c.l.b16 %v417
    %v573 = vunpack.c.h.b16 %v417
    %v574 = vunpack.c.l.b16 %v418
    %v575 = vunpack.c.h.b16 %v418
    %v576 = vunpack.c.l.b16 %v419
    %v577 = vunpack.c.h.b16 %v419
    %v578 = vunpack.c.l.b16 %v420
    %v579 = vunpack.c.h.b16 %v420
    %v580 = vunpack.c.l.b16 %v421
    %v581 = vunpack.c.h.b16 %v421
    %v582 = vunpack.c.l.b16 %v422
    %v583 = vunpack.c.h.b16 %v422
    %v584 = vunpack.c.l.b16 %v423
    %v585 = vunpack.c.h.b16 %v423
    %v586 = vunpack.c.l.b16 %v424
    %v587 = vunpack.c.h.b16 %v424
    %v588 = vunpack.c.l.b16 %v425
    %v589 = vunpack.c.h.b16 %v425
    %v590 = vunpack.c.l.b16 %v426
    %v591 = vunpack.c.h.b16 %v426
    %v592 = vunpack.c.l.b16 %v427
    %v593 = vunpack.c.h.b16 %v427
    %v594 = vunpack.c.l.b16 %v428
    %v595 = vunpack.c.h.b16 %v428
    %v596 = vunpack.c.l.b16 %v429
    %v597 = vunpack.c.h.b16 %v429
    %v598 = vunpack.c.l.b16 %v430
    %v599 = vunpack.c.h.b16 %v430
    %v600 = vunpack.c.l.b16 %v431
    %v601 = vunpack.c.h.b16 %v431
    %v602 = vunpack.c.l.b16 %v432
    %v603 = vunpack.c.h.b16 %v432
    %v604 = vunpack.c.l.b16 %v433
    %v605 = vunpack.c.h.b16 %v433
    %v606 = vunpack.c.l.b16 %v434
    %v607 = vunpack.c.h.b16 %v434
    %v608 = vunpack.c.l.b16 %v435
    %v609 = vunpack.c.h.b16 %v435
    %v610 = vunpack.c.l.b16 %v436
    %v611 = vunpack.c.h.b16 %v436
    %v612 = vunpack.c.l.b16 %v437
    %v613 = vunpack.c.h.b16 %v437
    %v614 = vunpack.c.l.b16 %v438
    %v615 = vunpack.c.h.b16 %v438
    %v616 = vunpack.c.l.b16 %v439
    %v617 = vunpack.c.h.b16 %v439
    %v618 = vunpack.c.l.b16 %v440
    %v619 = vunpack.c.h.b16 %v440
    %v620 = vunpack.c.l.b16 %v441
    %v621 = vunpack.c.h.b16 %v441
    %v622 = vunpack.c.l.b16 %v442
    %v623 = vunpack.c.h.b16 %v442
    %v624 = vunpack.c.l.b16 %v443
    %v625 = vunpack.c.h.b16 %v443
    %v626 = vunpack.c.l.b16 %v444
    %v627 = vunpack.c.h.b16 %v444
    %v628 = vunpack.c.l.b16 %v445
    %v629 = vunpack.c.h.b16 %v445
    %v630 = vunpack.c.l.b16 %v446
    %v631 = vunpack.c.h.b16 %v446
    %v632 = vunpack.c.l.b16 %v447
    %v633 = vunpack.c.h.b16 %v447
    %v634 = vunpack.c.l.b16 %v448
    %v635 = vunpack.c.h.b16 %v448
    %v636 = vunpack.c.l.b16 %v449
    %v637 = vunpack.c.h.b16 %v449
    %v638 = vunpack.c.l.b16 %v450
    %v639 = vunpack.c.h.b16 %v450
    %v640 = vunpack.c.l.b16 %v451
    %v641 = vunpack.c.h.b16 %v451
    %v642 = vunpack.c.l.b16 %v452
    %v643 = vunpack.c.h.b16 %v452
    %v644 = vunpack.c.l.b16 %v453
    %v645 = vunpack.c.h.b16 %v453
    %v646 = vpack.c.b16 %v520, %v518
    %v647 = vpack.c.b16 %v521, %v519
    %v648 = vpack.c.b16 %v524, %v522
    %v649 = vpack.c.b16 %v525, %v523
    %v650 = vpack.c.b16 %v528, %v526
    %v651 = vpack.c.b16 %v529, %v527
    %v652 = vpack.c.b16 %v532, %v530
    %v653 = vpack.c.b16 %v533, %v531
    %v654 = vpack.c.b16 %v536, %v534
    %v655 = vpack.c.b16 %v537, %v535
    %v656 = vpack.c.b16 %v540, %v538
    %v657 = vpack.c.b16 %v541, %v539
    %v658 = vpack.c.b16 %v544, %v542
    %v659 = vpack.c.b16 %v545, %v543
    %v660 = vpack.c.b16 %v548, %v546
    %v661 = vpack.c.b16 %v549, %v547
    %v662 = vpack.c.b16 %v552, %v550
    %v663 = vpack.c.b16 %v553, %v551
    %v664 = vpack.c.b16 %v556, %v554
    %v665 = vpack.c.b16 %v557, %v555
    %v666 = vpack.c.b16 %v560, %v558
    %v667 = vpack.c.b16 %v561, %v559
    %v668 = vpack.c.b16 %v564, %v562
    %v669 = vpack.c.b16 %v565, %v563
    %v670 = vpack.c.b16 %v568, %v566
    %v671 = vpack.c.b16 %v569, %v567
    %v672 = vpack.c.b16 %v572, %v570
    %v673 = vpack.c.b16 %v573, %v571
    %v674 = vpack.c.b16 %v576, %v574
    %v675 = vpack.c.b16 %v577, %v575
    %v676 = vpack.c.b16 %v580, %v578
    %v677 = vpack.c.b16 %v581, %v579
    %v678 = vpack.c.b16 %v584, %v582
    %v679 = vpack.c.b16 %v585, %v583
    %v680 = vpack.c.b16 %v588, %v586
    %v681 = vpack.c.b16 %v589, %v587
    %v682 = vpack.c.b16 %v592, %v590
    %v683 = vpack.c.b16 %v593, %v591
    %v684 = vpack.c.b16 %v596, %v594
    %v685 = vpack.c.b16 %v597, %v595
    %v686 = vpack.c.b16 %v600, %v598
    %v687 = vpack.c.b16 %v601, %v599
    %v688 = vpack.c.b16 %v604, %v602
    %v689 = vpack.c.b16 %v605, %v603
    %v690 = vpack.c.b16 %v608, %v606
    %v691 = vpack.c.b16 %v609, %v607
    %v692 = vpack.c.b16 %v612, %v610
    %v693 = vpack.c.b16 %v613, %v611
    %v694 = vpack.c.b16 %v616, %v614
    %v695 = vpack.c.b16 %v617, %v615
    %v696 = vpack.c.b16 %v620, %v618
    %v697 = vpack.c.b16 %v621, %v619
    %v698 = vpack.c.b16 %v624, %v622
    %v699 = vpack.c.b16 %v625, %v623
    %v700 = vpack.c.b16 %v628, %v626
    %v701 = vpack.c.b16 %v629, %v627
    %v702 = vpack.c.b16 %v632, %v630
    %v703 = vpack.c.b16 %v633, %v631
    %v704 = vpack.c.b16 %v636, %v634
    %v705 = vpack.c.b16 %v637, %v635
    %v706 = vpack.c.b16 %v640, %v638
    %v707 = vpack.c.b16 %v641, %v639
    %v708 = vpack.c.b16 %v644, %v642
    %v709 = vpack.c.b16 %v645, %v643
    %774 = vmatprep.subr.bf16.mxu0 %v647
    %775 = vmatpush1.bf16.msra.mxu0 %v646
    %776 = vmatprep.subr.bf16.mxu0 %v649
    %777 = vmatpush1.bf16.msra.mxu0 %v648
    %778 = vmatprep.subr.bf16.mxu0 %v651
    %779 = vmatpush1.bf16.msra.mxu0 %v650
    %780 = vmatprep.subr.bf16.mxu0 %v653
    %781 = vmatpush1.bf16.msra.mxu0 %v652
    %782 = vmatprep.subr.bf16.mxu0 %v655
    %783 = vmatpush1.bf16.msra.mxu0 %v654
    %784 = vmatprep.subr.bf16.mxu0 %v657
    %785 = vmatpush1.bf16.msra.mxu0 %v656
    %786 = vmatprep.subr.bf16.mxu0 %v659
    %787 = vmatpush1.bf16.msra.mxu0 %v658
    %788 = vmatprep.subr.bf16.mxu0 %v661
    %789 = vmatpush1.bf16.msra.mxu0 %v660
    %790 = vmatprep.subr.bf16.mxu0 %v663
    %791 = vmatpush1.bf16.msra.mxu0 %v662
    %792 = vmatprep.subr.bf16.mxu0 %v665
    %793 = vmatpush1.bf16.msra.mxu0 %v664
    %794 = vmatprep.subr.bf16.mxu0 %v667
    %795 = vmatpush1.bf16.msra.mxu0 %v666
    %796 = vmatprep.subr.bf16.mxu0 %v669
    %797 = vmatpush1.bf16.msra.mxu0 %v668
    %798 = vmatprep.subr.bf16.mxu0 %v671
    %799 = vmatpush1.bf16.msra.mxu0 %v670
    %800 = vmatprep.subr.bf16.mxu0 %v673
    %801 = vmatpush1.bf16.msra.mxu0 %v672
    %802 = vmatprep.subr.bf16.mxu0 %v675
    %803 = vmatpush1.bf16.msra.mxu0 %v674
    %804 = vmatprep.subr.bf16.mxu0 %v677
    %805 = vmatpush1.bf16.msra.mxu0 %v676
    %806 = vmatprep.mubr.bf16.mxu0 %v387
    %807 = vmatmul.mubr.bf16.gmra.mrb[0].mxu0 %v386
    %v808 = vpop.f32.mrb[0].mxu0
    %v809 = vadd.f32 0.0, %v808
    %v810 = vpop.f32.mrb[0].mxu0
    %v811 = vadd.f32 0.0, %v810
    %v812 = vpop.f32.mrb[0].mxu0
    %v813 = vadd.f32 0.0, %v812
    %v814 = vpop.f32.mrb[0].mxu0
    %v815 = vadd.f32 0.0, %v814
    %816 = vdwg.mxu0
    %817 = vmatprep.subr.bf16.mxu0 %v679
    %818 = vmatpush1.bf16.msra.mxu0 %v678
    %819 = vmatprep.subr.bf16.mxu0 %v681
    %820 = vmatpush1.bf16.msra.mxu0 %v680
    %821 = vmatprep.subr.bf16.mxu0 %v683
    %822 = vmatpush1.bf16.msra.mxu0 %v682
    %823 = vmatprep.subr.bf16.mxu0 %v685
    %824 = vmatpush1.bf16.msra.mxu0 %v684
    %825 = vmatprep.subr.bf16.mxu0 %v687
    %826 = vmatpush1.bf16.msra.mxu0 %v686
    %827 = vmatprep.subr.bf16.mxu0 %v689
    %828 = vmatpush1.bf16.msra.mxu0 %v688
    %829 = vmatprep.subr.bf16.mxu0 %v691
    %830 = vmatpush1.bf16.msra.mxu0 %v690
    %831 = vmatprep.subr.bf16.mxu0 %v693
    %832 = vmatpush1.bf16.msra.mxu0 %v692
    %833 = vmatprep.subr.bf16.mxu0 %v695
    %834 = vmatpush1.bf16.msra.mxu0 %v694
    %835 = vmatprep.subr.bf16.mxu0 %v697
    %836 = vmatpush1.bf16.msra.mxu0 %v696
    %837 = vmatprep.subr.bf16.mxu0 %v699
    %838 = vmatpush1.bf16.msra.mxu0 %v698
    %839 = vmatprep.subr.bf16.mxu0 %v701
    %840 = vmatpush1.bf16.msra.mxu0 %v700
    %841 = vmatprep.subr.bf16.mxu0 %v703
    %842 = vmatpush1.bf16.msra.mxu0 %v702
    %843 = vmatprep.subr.bf16.mxu0 %v705
    %844 = vmatpush1.bf16.msra.mxu0 %v704
    %845 = vmatprep.subr.bf16.mxu0 %v707
    %846 = vmatpush1.bf16.msra.mxu0 %v706
    %847 = vmatprep.subr.bf16.mxu0 %v709
    %848 = vmatpush1.bf16.msra.mxu0 %v708
    %849 = vmatprep.mubr.bf16.mxu0 %v389
    %850 = vmatmul.mubr.bf16.gmra.mrb[0].mxu0 %v388
    %v851 = vpop.f32.mrb[0].mxu0
    %v852 = vadd.f32 %v809, %v851
    %v853 = vpop.f32.mrb[0].mxu0
    %v854 = vadd.f32 %v811, %v853
    %v855 = vpop.f32.mrb[0].mxu0
    %v856 = vadd.f32 %v813, %v855
    %v857 = vpop.f32.mrb[0].mxu0
    %v858 = vadd.f32 %v815, %v857
    %859 = vdwg.mxu0
    %860 = vst [vmem:[#allocation10] sm:$0xff] %v852
    %861 = vst [vmem:[#allocation10 + $0x8] sm:$0xff] %v854
    %862 = vst [vmem:[#allocation10 + $0x10] sm:$0xff] %v856
    %863 = vst [vmem:[#allocation10 + $0x18] sm:$0xff] %v858
    %v864 = vld [vmem:[#allocation5 + $0x10] sm:$0xff]
    %v865 = vld [vmem:[#allocation5 + $0x18] sm:$0xff]
    %v866 = vld [vmem:[#allocation5 + $0x50] sm:$0xff]
    %v867 = vld [vmem:[#allocation5 + $0x58] sm:$0xff]
    %v868 = vld [vmem:[#allocation5 + $0x90] sm:$0xff]
    %v869 = vld [vmem:[#allocation5 + $0x98] sm:$0xff]
    %v870 = vld [vmem:[#allocation5 + $0xd0] sm:$0xff]
    %v871 = vld [vmem:[#allocation5 + $0xd8] sm:$0xff]
    %v872 = vld [vmem:[#allocation5 + $0x110] sm:$0xff]
    %v873 = vld [vmem:[#allocation5 + $0x118] sm:$0xff]
    %v874 = vld [vmem:[#allocation5 + $0x150] sm:$0xff]
    %v875 = vld [vmem:[#allocation5 + $0x158] sm:$0xff]
    %v876 = vld [vmem:[#allocation5 + $0x190] sm:$0xff]
    %v877 = vld [vmem:[#allocation5 + $0x198] sm:$0xff]
    %v878 = vld [vmem:[#allocation5 + $0x1d0] sm:$0xff]
    %v879 = vld [vmem:[#allocation5 + $0x1d8] sm:$0xff]
    %v880 = vld [vmem:[#allocation5 + $0x210] sm:$0xff]
    %v881 = vld [vmem:[#allocation5 + $0x218] sm:$0xff]
    %v882 = vld [vmem:[#allocation5 + $0x250] sm:$0xff]
    %v883 = vld [vmem:[#allocation5 + $0x258] sm:$0xff]
    %v884 = vld [vmem:[#allocation5 + $0x290] sm:$0xff]
    %v885 = vld [vmem:[#allocation5 + $0x298] sm:$0xff]
    %v886 = vld [vmem:[#allocation5 + $0x2d0] sm:$0xff]
    %v887 = vld [vmem:[#allocation5 + $0x2d8] sm:$0xff]
    %v888 = vld [vmem:[#allocation5 + $0x310] sm:$0xff]
    %v889 = vld [vmem:[#allocation5 + $0x318] sm:$0xff]
    %v890 = vld [vmem:[#allocation5 + $0x350] sm:$0xff]
    %v891 = vld [vmem:[#allocation5 + $0x358] sm:$0xff]
    %v892 = vld [vmem:[#allocation5 + $0x390] sm:$0xff]
    %v893 = vld [vmem:[#allocation5 + $0x398] sm:$0xff]
    %v894 = vld [vmem:[#allocation5 + $0x3d0] sm:$0xff]
    %v895 = vld [vmem:[#allocation5 + $0x3d8] sm:$0xff]
    %v896 = vld [vmem:[#allocation7 + $0x4] sm:$0xf]
    %v898 = vlaneseq
    %v899 = vshrl.u32 %v898, 7
    %v900 = vsub.s32 0, %v899
    %v901 = vrot.slane %v896, %v900
    %v902 = vlaneseq
    %v903 = vshrl.u32 %v902, 7
    %v904 = vsub.s32 1, %v903
    %v905 = vrot.slane %v896, %v904
    %v906 = vlaneseq
    %v907 = vshrl.u32 %v906, 7
    %v908 = vsub.s32 2, %v907
    %v909 = vrot.slane %v896, %v908
    %v910 = vlaneseq
    %v911 = vshrl.u32 %v910, 7
    %v912 = vsub.s32 3, %v911
    %v913 = vrot.slane %v896, %v912
    %v950 = vunpack.c.l.b16 %v864
    %v951 = vunpack.c.h.b16 %v864
    %v952 = vunpack.c.l.b16 %v865
    %v953 = vunpack.c.h.b16 %v865
    %v954 = vunpack.c.l.b16 %v866
    %v955 = vunpack.c.h.b16 %v866
    %v956 = vunpack.c.l.b16 %v867
    %v957 = vunpack.c.h.b16 %v867
    %v958 = vunpack.c.l.b16 %v868
    %v959 = vunpack.c.h.b16 %v868
    %v960 = vunpack.c.l.b16 %v869
    %v961 = vunpack.c.h.b16 %v869
    %v962 = vunpack.c.l.b16 %v870
    %v963 = vunpack.c.h.b16 %v870
    %v964 = vunpack.c.l.b16 %v871
    %v965 = vunpack.c.h.b16 %v871
    %v966 = vunpack.c.l.b16 %v872
    %v967 = vunpack.c.h.b16 %v872
    %v968 = vunpack.c.l.b16 %v873
    %v969 = vunpack.c.h.b16 %v873
    %v970 = vunpack.c.l.b16 %v874
    %v971 = vunpack.c.h.b16 %v874
    %v972 = vunpack.c.l.b16 %v875
    %v973 = vunpack.c.h.b16 %v875
    %v974 = vunpack.c.l.b16 %v876
    %v975 = vunpack.c.h.b16 %v876
    %v976 = vunpack.c.l.b16 %v877
    %v977 = vunpack.c.h.b16 %v877
    %v978 = vunpack.c.l.b16 %v878
    %v979 = vunpack.c.h.b16 %v878
    %v980 = vunpack.c.l.b16 %v879
    %v981 = vunpack.c.h.b16 %v879
    %v982 = vunpack.c.l.b16 %v880
    %v983 = vunpack.c.h.b16 %v880
    %v984 = vunpack.c.l.b16 %v881
    %v985 = vunpack.c.h.b16 %v881
    %v986 = vunpack.c.l.b16 %v882
    %v987 = vunpack.c.h.b16 %v882
    %v988 = vunpack.c.l.b16 %v883
    %v989 = vunpack.c.h.b16 %v883
    %v990 = vunpack.c.l.b16 %v884
    %v991 = vunpack.c.h.b16 %v884
    %v992 = vunpack.c.l.b16 %v885
    %v993 = vunpack.c.h.b16 %v885
    %v994 = vunpack.c.l.b16 %v886
    %v995 = vunpack.c.h.b16 %v886
    %v996 = vunpack.c.l.b16 %v887
    %v997 = vunpack.c.h.b16 %v887
    %v998 = vunpack.c.l.b16 %v888
    %v999 = vunpack.c.h.b16 %v888
    %v1000 = vunpack.c.l.b16 %v889
    %v1001 = vunpack.c.h.b16 %v889
    %v1002 = vunpack.c.l.b16 %v890
    %v1003 = vunpack.c.h.b16 %v890
    %v1004 = vunpack.c.l.b16 %v891
    %v1005 = vunpack.c.h.b16 %v891
    %v1006 = vunpack.c.l.b16 %v892
    %v1007 = vunpack.c.h.b16 %v892
    %v1008 = vunpack.c.l.b16 %v893
    %v1009 = vunpack.c.h.b16 %v893
    %v1010 = vunpack.c.l.b16 %v894
    %v1011 = vunpack.c.h.b16 %v894
    %v1012 = vunpack.c.l.b16 %v895
    %v1013 = vunpack.c.h.b16 %v895
    %v1014 = vpack.c.b16 %v954, %v950
    %v1015 = vpack.c.b16 %v955, %v951
    %v1016 = vpack.c.b16 %v956, %v952
    %v1017 = vpack.c.b16 %v957, %v953
    %v1018 = vpack.c.b16 %v962, %v958
    %v1019 = vpack.c.b16 %v963, %v959
    %v1020 = vpack.c.b16 %v964, %v960
    %v1021 = vpack.c.b16 %v965, %v961
    %v1022 = vpack.c.b16 %v970, %v966
    %v1023 = vpack.c.b16 %v971, %v967
    %v1024 = vpack.c.b16 %v972, %v968
    %v1025 = vpack.c.b16 %v973, %v969
    %v1026 = vpack.c.b16 %v978, %v974
    %v1027 = vpack.c.b16 %v979, %v975
    %v1028 = vpack.c.b16 %v980, %v976
    %v1029 = vpack.c.b16 %v981, %v977
    %v1030 = vpack.c.b16 %v986, %v982
    %v1031 = vpack.c.b16 %v987, %v983
    %v1032 = vpack.c.b16 %v988, %v984
    %v1033 = vpack.c.b16 %v989, %v985
    %v1034 = vpack.c.b16 %v994, %v990
    %v1035 = vpack.c.b16 %v995, %v991
    %v1036 = vpack.c.b16 %v996, %v992
    %v1037 = vpack.c.b16 %v997, %v993
    %v1038 = vpack.c.b16 %v1002, %v998
    %v1039 = vpack.c.b16 %v1003, %v999
    %v1040 = vpack.c.b16 %v1004, %v1000
    %v1041 = vpack.c.b16 %v1005, %v1001
    %v1042 = vpack.c.b16 %v1010, %v1006
    %v1043 = vpack.c.b16 %v1011, %v1007
    %v1044 = vpack.c.b16 %v1012, %v1008
    %v1045 = vpack.c.b16 %v1013, %v1009
    %1078 = vmatprep.subr.bf16.mxu0 %v1015
    %1079 = vmatpush1.bf16.msra.mxu0 %v1014
    %1080 = vmatprep.subr.bf16.mxu0 %v1019
    %1081 = vmatpush1.bf16.msra.mxu0 %v1018
    %1082 = vmatprep.subr.bf16.mxu0 %v1023
    %1083 = vmatpush1.bf16.msra.mxu0 %v1022
    %1084 = vmatprep.subr.bf16.mxu0 %v1027
    %1085 = vmatpush1.bf16.msra.mxu0 %v1026
    %1086 = vmatprep.subr.bf16.mxu0 %v1031
    %1087 = vmatpush1.bf16.msra.mxu0 %v1030
    %1088 = vmatprep.subr.bf16.mxu0 %v1035
    %1089 = vmatpush1.bf16.msra.mxu0 %v1034
    %1090 = vmatprep.subr.bf16.mxu0 %v1039
    %1091 = vmatpush1.bf16.msra.mxu0 %v1038
    %1092 = vmatprep.subr.bf16.mxu0 %v1043
    %1093 = vmatpush1.bf16.msra.mxu0 %v1042
    %1094 = vmatprep.subr.bf16.mxu0 0
    %1095 = vmatpush1.bf16.msra.mxu0 0
    %1096 = vmatprep.subr.bf16.mxu0 0
    %1097 = vmatpush1.bf16.msra.mxu0 0
    %1098 = vmatprep.subr.bf16.mxu0 0
    %1099 = vmatpush1.bf16.msra.mxu0 0
    %1100 = vmatprep.subr.bf16.mxu0 0
    %1101 = vmatpush1.bf16.msra.mxu0 0
    %1102 = vmatprep.subr.bf16.mxu0 0
    %1103 = vmatpush1.bf16.msra.mxu0 0
    %1104 = vmatprep.subr.bf16.mxu0 0
    %1105 = vmatpush1.bf16.msra.mxu0 0
    %1106 = vmatprep.subr.bf16.mxu0 0
    %1107 = vmatpush1.bf16.msra.mxu0 0
    %1108 = vmatprep.subr.bf16.mxu0 0
    %1109 = vmatpush1.bf16.msra.mxu0 0
    %1110 = vmatprep.mubr.bf16.mxu0 0
    %1111 = vmatmul.mubr.bf16.gmra.mrb[0].mxu0 %v77
    %v1112 = vpop.f32.mrb[0].mxu0
    %v1113 = vadd.f32 %v901, %v1112
    %v1114 = vpop.f32.mrb[0].mxu0
    %v1115 = vadd.f32 %v905, %v1114
    %v1116 = vpop.f32.mrb[0].mxu0
    %v1117 = vadd.f32 %v901, %v1116
    %v1118 = vpop.f32.mrb[0].mxu0
    %v1119 = vadd.f32 %v905, %v1118
    %1120 = vdwg.mxu0
    %1121 = vmatprep.subr.bf16.mxu0 %v1017
    %1122 = vmatpush1.bf16.msra.mxu0 %v1016
    %1123 = vmatprep.subr.bf16.mxu0 %v1021
    %1124 = vmatpush1.bf16.msra.mxu0 %v1020
    %1125 = vmatprep.subr.bf16.mxu0 %v1025
    %1126 = vmatpush1.bf16.msra.mxu0 %v1024
    %1127 = vmatprep.subr.bf16.mxu0 %v1029
    %1128 = vmatpush1.bf16.msra.mxu0 %v1028
    %1129 = vmatprep.subr.bf16.mxu0 %v1033
    %1130 = vmatpush1.bf16.msra.mxu0 %v1032
    %1131 = vmatprep.subr.bf16.mxu0 %v1037
    %1132 = vmatpush1.bf16.msra.mxu0 %v1036
    %1133 = vmatprep.subr.bf16.mxu0 %v1041
    %1134 = vmatpush1.bf16.msra.mxu0 %v1040
    %1135 = vmatprep.subr.bf16.mxu0 %v1045
    %1136 = vmatpush1.bf16.msra.mxu0 %v1044
    %1137 = vmatprep.subr.bf16.mxu0 0
    %1138 = vmatpush1.bf16.msra.mxu0 0
    %1139 = vmatprep.subr.bf16.mxu0 0
    %1140 = vmatpush1.bf16.msra.mxu0 0
    %1141 = vmatprep.subr.bf16.mxu0 0
    %1142 = vmatpush1.bf16.msra.mxu0 0
    %1143 = vmatprep.subr.bf16.mxu0 0
    %1144 = vmatpush1.bf16.msra.mxu0 0
    %1145 = vmatprep.subr.bf16.mxu0 0
    %1146 = vmatpush1.bf16.msra.mxu0 0
    %1147 = vmatprep.subr.bf16.mxu0 0
    %1148 = vmatpush1.bf16.msra.mxu0 0
    %1149 = vmatprep.subr.bf16.mxu0 0
    %1150 = vmatpush1.bf16.msra.mxu0 0
    %1151 = vmatprep.subr.bf16.mxu0 0
    %1152 = vmatpush1.bf16.msra.mxu0 0
    %1153 = vmatprep.mubr.bf16.mxu0 0
    %1154 = vmatmul.mubr.bf16.gmra.mrb[0].mxu0 %v77
    %v1155 = vpop.f32.mrb[0].mxu0
    %v1156 = vadd.f32 %v909, %v1155
    %v1157 = vpop.f32.mrb[0].mxu0
    %v1158 = vadd.f32 %v913, %v1157
    %v1159 = vpop.f32.mrb[0].mxu0
    %v1160 = vadd.f32 %v909, %v1159
    %v1161 = vpop.f32.mrb[0].mxu0
    %v1162 = vadd.f32 %v913, %v1161
    %1163 = vdwg.mxu0
    %v1164 = vmax.f32 %v1113, 0.0
    %v1165 = vmax.f32 %v1115, 0.0
    %v1166 = vmax.f32 %v1156, 0.0
    %v1167 = vmax.f32 %v1158, 0.0
    %v1168 = vmax.f32 %v1117, 0.0
    %v1169 = vmax.f32 %v1119, 0.0
    %v1170 = vmax.f32 %v1160, 0.0
    %v1171 = vmax.f32 %v1162, 0.0
    %v1172 = vpack.c.bf16 %v1168, %v1164
    %v1173 = vpack.c.bf16 %v1169, %v1165
    %v1174 = vpack.c.bf16 %v1170, %v1166
    %v1175 = vpack.c.bf16 %v1171, %v1167
    %v1176 = vld [vmem:[#allocation8 + $0x200] sm:$0xff]
    %v1177 = vld [vmem:[#allocation8 + $0x208] sm:$0xff]
    %v1178 = vld [vmem:[#allocation8 + $0x210] sm:$0xff]
    %v1179 = vld [vmem:[#allocation8 + $0x218] sm:$0xff]
    %v1180 = vld [vmem:[#allocation8 + $0x220] sm:$0xff]
    %v1181 = vld [vmem:[#allocation8 + $0x228] sm:$0xff]
    %v1182 = vld [vmem:[#allocation8 + $0x230] sm:$0xff]
    %v1183 = vld [vmem:[#allocation8 + $0x238] sm:$0xff]
    %v1184 = vld [vmem:[#allocation8 + $0x240] sm:$0xff]
    %v1185 = vld [vmem:[#allocation8 + $0x248] sm:$0xff]
    %v1186 = vld [vmem:[#allocation8 + $0x250] sm:$0xff]
    %v1187 = vld [vmem:[#allocation8 + $0x258] sm:$0xff]
    %v1188 = vld [vmem:[#allocation8 + $0x260] sm:$0xff]
    %v1189 = vld [vmem:[#allocation8 + $0x268] sm:$0xff]
    %v1190 = vld [vmem:[#allocation8 + $0x270] sm:$0xff]
    %v1191 = vld [vmem:[#allocation8 + $0x278] sm:$0xff]
    %v1192 = vld [vmem:[#allocation8 + $0x280] sm:$0xff]
    %v1193 = vld [vmem:[#allocation8 + $0x288] sm:$0xff]
    %v1194 = vld [vmem:[#allocation8 + $0x290] sm:$0xff]
    %v1195 = vld [vmem:[#allocation8 + $0x298] sm:$0xff]
    %v1196 = vld [vmem:[#allocation8 + $0x2a0] sm:$0xff]
    %v1197 = vld [vmem:[#allocation8 + $0x2a8] sm:$0xff]
    %v1198 = vld [vmem:[#allocation8 + $0x2b0] sm:$0xff]
    %v1199 = vld [vmem:[#allocation8 + $0x2b8] sm:$0xff]
    %v1200 = vld [vmem:[#allocation8 + $0x2c0] sm:$0xff]
    %v1201 = vld [vmem:[#allocation8 + $0x2c8] sm:$0xff]
    %v1202 = vld [vmem:[#allocation8 + $0x2d0] sm:$0xff]
    %v1203 = vld [vmem:[#allocation8 + $0x2d8] sm:$0xff]
    %v1204 = vld [vmem:[#allocation8 + $0x2e0] sm:$0xff]
    %v1205 = vld [vmem:[#allocation8 + $0x2e8] sm:$0xff]
    %v1206 = vld [vmem:[#allocation8 + $0x2f0] sm:$0xff]
    %v1207 = vld [vmem:[#allocation8 + $0x2f8] sm:$0xff]
    %v1208 = vld [vmem:[#allocation8 + $0x300] sm:$0xff]
    %v1209 = vld [vmem:[#allocation8 + $0x308] sm:$0xff]
    %v1210 = vld [vmem:[#allocation8 + $0x310] sm:$0xff]
    %v1211 = vld [vmem:[#allocation8 + $0x318] sm:$0xff]
    %v1212 = vld [vmem:[#allocation8 + $0x320] sm:$0xff]
    %v1213 = vld [vmem:[#allocation8 + $0x328] sm:$0xff]
    %v1214 = vld [vmem:[#allocation8 + $0x330] sm:$0xff]
    %v1215 = vld [vmem:[#allocation8 + $0x338] sm:$0xff]
    %v1216 = vld [vmem:[#allocation8 + $0x340] sm:$0xff]
    %v1217 = vld [vmem:[#allocation8 + $0x348] sm:$0xff]
    %v1218 = vld [vmem:[#allocation8 + $0x350] sm:$0xff]
    %v1219 = vld [vmem:[#allocation8 + $0x358] sm:$0xff]
    %v1220 = vld [vmem:[#allocation8 + $0x360] sm:$0xff]
    %v1221 = vld [vmem:[#allocation8 + $0x368] sm:$0xff]
    %v1222 = vld [vmem:[#allocation8 + $0x370] sm:$0xff]
    %v1223 = vld [vmem:[#allocation8 + $0x378] sm:$0xff]
    %v1224 = vld [vmem:[#allocation8 + $0x380] sm:$0xff]
    %v1225 = vld [vmem:[#allocation8 + $0x388] sm:$0xff]
    %v1226 = vld [vmem:[#allocation8 + $0x390] sm:$0xff]
    %v1227 = vld [vmem:[#allocation8 + $0x398] sm:$0xff]
    %v1228 = vld [vmem:[#allocation8 + $0x3a0] sm:$0xff]
    %v1229 = vld [vmem:[#allocation8 + $0x3a8] sm:$0xff]
    %v1230 = vld [vmem:[#allocation8 + $0x3b0] sm:$0xff]
    %v1231 = vld [vmem:[#allocation8 + $0x3b8] sm:$0xff]
    %v1232 = vld [vmem:[#allocation8 + $0x3c0] sm:$0xff]
    %v1233 = vld [vmem:[#allocation8 + $0x3c8] sm:$0xff]
    %v1234 = vld [vmem:[#allocation8 + $0x3d0] sm:$0xff]
    %v1235 = vld [vmem:[#allocation8 + $0x3d8] sm:$0xff]
    %v1236 = vld [vmem:[#allocation8 + $0x3e0] sm:$0xff]
    %v1237 = vld [vmem:[#allocation8 + $0x3e8] sm:$0xff]
    %v1238 = vld [vmem:[#allocation8 + $0x3f0] sm:$0xff]
    %v1239 = vld [vmem:[#allocation8 + $0x3f8] sm:$0xff]
    %v1304 = vunpack.c.l.b16 %v1176
    %v1305 = vunpack.c.h.b16 %v1176
    %v1306 = vunpack.c.l.b16 %v1177
    %v1307 = vunpack.c.h.b16 %v1177
    %v1308 = vunpack.c.l.b16 %v1178
    %v1309 = vunpack.c.h.b16 %v1178
    %v1310 = vunpack.c.l.b16 %v1179
    %v1311 = vunpack.c.h.b16 %v1179
    %v1312 = vunpack.c.l.b16 %v1180
    %v1313 = vunpack.c.h.b16 %v1180
    %v1314 = vunpack.c.l.b16 %v1181
    %v1315 = vunpack.c.h.b16 %v1181
    %v1316 = vunpack.c.l.b16 %v1182
    %v1317 = vunpack.c.h.b16 %v1182
    %v1318 = vunpack.c.l.b16 %v1183
    %v1319 = vunpack.c.h.b16 %v1183
    %v1320 = vunpack.c.l.b16 %v1184
    %v1321 = vunpack.c.h.b16 %v1184
    %v1322 = vunpack.c.l.b16 %v1185
    %v1323 = vunpack.c.h.b16 %v1185
    %v1324 = vunpack.c.l.b16 %v1186
    %v1325 = vunpack.c.h.b16 %v1186
    %v1326 = vunpack.c.l.b16 %v1187
    %v1327 = vunpack.c.h.b16 %v1187
    %v1328 = vunpack.c.l.b16 %v1188
    %v1329 = vunpack.c.h.b16 %v1188
    %v1330 = vunpack.c.l.b16 %v1189
    %v1331 = vunpack.c.h.b16 %v1189
    %v1332 = vunpack.c.l.b16 %v1190
    %v1333 = vunpack.c.h.b16 %v1190
    %v1334 = vunpack.c.l.b16 %v1191
    %v1335 = vunpack.c.h.b16 %v1191
    %v1336 = vunpack.c.l.b16 %v1192
    %v1337 = vunpack.c.h.b16 %v1192
    %v1338 = vunpack.c.l.b16 %v1193
    %v1339 = vunpack.c.h.b16 %v1193
    %v1340 = vunpack.c.l.b16 %v1194
    %v1341 = vunpack.c.h.b16 %v1194
    %v1342 = vunpack.c.l.b16 %v1195
    %v1343 = vunpack.c.h.b16 %v1195
    %v1344 = vunpack.c.l.b16 %v1196
    %v1345 = vunpack.c.h.b16 %v1196
    %v1346 = vunpack.c.l.b16 %v1197
    %v1347 = vunpack.c.h.b16 %v1197
    %v1348 = vunpack.c.l.b16 %v1198
    %v1349 = vunpack.c.h.b16 %v1198
    %v1350 = vunpack.c.l.b16 %v1199
    %v1351 = vunpack.c.h.b16 %v1199
    %v1352 = vunpack.c.l.b16 %v1200
    %v1353 = vunpack.c.h.b16 %v1200
    %v1354 = vunpack.c.l.b16 %v1201
    %v1355 = vunpack.c.h.b16 %v1201
    %v1356 = vunpack.c.l.b16 %v1202
    %v1357 = vunpack.c.h.b16 %v1202
    %v1358 = vunpack.c.l.b16 %v1203
    %v1359 = vunpack.c.h.b16 %v1203
    %v1360 = vunpack.c.l.b16 %v1204
    %v1361 = vunpack.c.h.b16 %v1204
    %v1362 = vunpack.c.l.b16 %v1205
    %v1363 = vunpack.c.h.b16 %v1205
    %v1364 = vunpack.c.l.b16 %v1206
    %v1365 = vunpack.c.h.b16 %v1206
    %v1366 = vunpack.c.l.b16 %v1207
    %v1367 = vunpack.c.h.b16 %v1207
    %v1368 = vunpack.c.l.b16 %v1208
    %v1369 = vunpack.c.h.b16 %v1208
    %v1370 = vunpack.c.l.b16 %v1209
    %v1371 = vunpack.c.h.b16 %v1209
    %v1372 = vunpack.c.l.b16 %v1210
    %v1373 = vunpack.c.h.b16 %v1210
    %v1374 = vunpack.c.l.b16 %v1211
    %v1375 = vunpack.c.h.b16 %v1211
    %v1376 = vunpack.c.l.b16 %v1212
    %v1377 = vunpack.c.h.b16 %v1212
    %v1378 = vunpack.c.l.b16 %v1213
    %v1379 = vunpack.c.h.b16 %v1213
    %v1380 = vunpack.c.l.b16 %v1214
    %v1381 = vunpack.c.h.b16 %v1214
    %v1382 = vunpack.c.l.b16 %v1215
    %v1383 = vunpack.c.h.b16 %v1215
    %v1384 = vunpack.c.l.b16 %v1216
    %v1385 = vunpack.c.h.b16 %v1216
    %v1386 = vunpack.c.l.b16 %v1217
    %v1387 = vunpack.c.h.b16 %v1217
    %v1388 = vunpack.c.l.b16 %v1218
    %v1389 = vunpack.c.h.b16 %v1218
    %v1390 = vunpack.c.l.b16 %v1219
    %v1391 = vunpack.c.h.b16 %v1219
    %v1392 = vunpack.c.l.b16 %v1220
    %v1393 = vunpack.c.h.b16 %v1220
    %v1394 = vunpack.c.l.b16 %v1221
    %v1395 = vunpack.c.h.b16 %v1221
    %v1396 = vunpack.c.l.b16 %v1222
    %v1397 = vunpack.c.h.b16 %v1222
    %v1398 = vunpack.c.l.b16 %v1223
    %v1399 = vunpack.c.h.b16 %v1223
    %v1400 = vunpack.c.l.b16 %v1224
    %v1401 = vunpack.c.h.b16 %v1224
    %v1402 = vunpack.c.l.b16 %v1225
    %v1403 = vunpack.c.h.b16 %v1225
    %v1404 = vunpack.c.l.b16 %v1226
    %v1405 = vunpack.c.h.b16 %v1226
    %v1406 = vunpack.c.l.b16 %v1227
    %v1407 = vunpack.c.h.b16 %v1227
    %v1408 = vunpack.c.l.b16 %v1228
    %v1409 = vunpack.c.h.b16 %v1228
    %v1410 = vunpack.c.l.b16 %v1229
    %v1411 = vunpack.c.h.b16 %v1229
    %v1412 = vunpack.c.l.b16 %v1230
    %v1413 = vunpack.c.h.b16 %v1230
    %v1414 = vunpack.c.l.b16 %v1231
    %v1415 = vunpack.c.h.b16 %v1231
    %v1416 = vunpack.c.l.b16 %v1232
    %v1417 = vunpack.c.h.b16 %v1232
    %v1418 = vunpack.c.l.b16 %v1233
    %v1419 = vunpack.c.h.b16 %v1233
    %v1420 = vunpack.c.l.b16 %v1234
    %v1421 = vunpack.c.h.b16 %v1234
    %v1422 = vunpack.c.l.b16 %v1235
    %v1423 = vunpack.c.h.b16 %v1235
    %v1424 = vunpack.c.l.b16 %v1236
    %v1425 = vunpack.c.h.b16 %v1236
    %v1426 = vunpack.c.l.b16 %v1237
    %v1427 = vunpack.c.h.b16 %v1237
    %v1428 = vunpack.c.l.b16 %v1238
    %v1429 = vunpack.c.h.b16 %v1238
    %v1430 = vunpack.c.l.b16 %v1239
    %v1431 = vunpack.c.h.b16 %v1239
    %v1432 = vpack.c.b16 %v1306, %v1304
    %v1433 = vpack.c.b16 %v1307, %v1305
    %v1434 = vpack.c.b16 %v1310, %v1308
    %v1435 = vpack.c.b16 %v1311, %v1309
    %v1436 = vpack.c.b16 %v1314, %v1312
    %v1437 = vpack.c.b16 %v1315, %v1313
    %v1438 = vpack.c.b16 %v1318, %v1316
    %v1439 = vpack.c.b16 %v1319, %v1317
    %v1440 = vpack.c.b16 %v1322, %v1320
    %v1441 = vpack.c.b16 %v1323, %v1321
    %v1442 = vpack.c.b16 %v1326, %v1324
    %v1443 = vpack.c.b16 %v1327, %v1325
    %v1444 = vpack.c.b16 %v1330, %v1328
    %v1445 = vpack.c.b16 %v1331, %v1329
    %v1446 = vpack.c.b16 %v1334, %v1332
    %v1447 = vpack.c.b16 %v1335, %v1333
    %v1448 = vpack.c.b16 %v1338, %v1336
    %v1449 = vpack.c.b16 %v1339, %v1337
    %v1450 = vpack.c.b16 %v1342, %v1340
    %v1451 = vpack.c.b16 %v1343, %v1341
    %v1452 = vpack.c.b16 %v1346, %v1344
    %v1453 = vpack.c.b16 %v1347, %v1345
    %v1454 = vpack.c.b16 %v1350, %v1348
    %v1455 = vpack.c.b16 %v1351, %v1349
    %v1456 = vpack.c.b16 %v1354, %v1352
    %v1457 = vpack.c.b16 %v1355, %v1353
    %v1458 = vpack.c.b16 %v1358, %v1356
    %v1459 = vpack.c.b16 %v1359, %v1357
    %v1460 = vpack.c.b16 %v1362, %v1360
    %v1461 = vpack.c.b16 %v1363, %v1361
    %v1462 = vpack.c.b16 %v1366, %v1364
    %v1463 = vpack.c.b16 %v1367, %v1365
    %v1464 = vpack.c.b16 %v1370, %v1368
    %v1465 = vpack.c.b16 %v1371, %v1369
    %v1466 = vpack.c.b16 %v1374, %v1372
    %v1467 = vpack.c.b16 %v1375, %v1373
    %v1468 = vpack.c.b16 %v1378, %v1376
    %v1469 = vpack.c.b16 %v1379, %v1377
    %v1470 = vpack.c.b16 %v1382, %v1380
    %v1471 = vpack.c.b16 %v1383, %v1381
    %v1472 = vpack.c.b16 %v1386, %v1384
    %v1473 = vpack.c.b16 %v1387, %v1385
    %v1474 = vpack.c.b16 %v1390, %v1388
    %v1475 = vpack.c.b16 %v1391, %v1389
    %v1476 = vpack.c.b16 %v1394, %v1392
    %v1477 = vpack.c.b16 %v1395, %v1393
    %v1478 = vpack.c.b16 %v1398, %v1396
    %v1479 = vpack.c.b16 %v1399, %v1397
    %v1480 = vpack.c.b16 %v1402, %v1400
    %v1481 = vpack.c.b16 %v1403, %v1401
    %v1482 = vpack.c.b16 %v1406, %v1404
    %v1483 = vpack.c.b16 %v1407, %v1405
    %v1484 = vpack.c.b16 %v1410, %v1408
    %v1485 = vpack.c.b16 %v1411, %v1409
    %v1486 = vpack.c.b16 %v1414, %v1412
    %v1487 = vpack.c.b16 %v1415, %v1413
    %v1488 = vpack.c.b16 %v1418, %v1416
    %v1489 = vpack.c.b16 %v1419, %v1417
    %v1490 = vpack.c.b16 %v1422, %v1420
    %v1491 = vpack.c.b16 %v1423, %v1421
    %v1492 = vpack.c.b16 %v1426, %v1424
    %v1493 = vpack.c.b16 %v1427, %v1425
    %v1494 = vpack.c.b16 %v1430, %v1428
    %v1495 = vpack.c.b16 %v1431, %v1429
    %1560 = vmatprep.subr.bf16.mxu0 %v1433
    %1561 = vmatpush1.bf16.msra.mxu0 %v1432
    %1562 = vmatprep.subr.bf16.mxu0 %v1435
    %1563 = vmatpush1.bf16.msra.mxu0 %v1434
    %1564 = vmatprep.subr.bf16.mxu0 %v1437
    %1565 = vmatpush1.bf16.msra.mxu0 %v1436
    %1566 = vmatprep.subr.bf16.mxu0 %v1439
    %1567 = vmatpush1.bf16.msra.mxu0 %v1438
    %1568 = vmatprep.subr.bf16.mxu0 %v1441
    %1569 = vmatpush1.bf16.msra.mxu0 %v1440
    %1570 = vmatprep.subr.bf16.mxu0 %v1443
    %1571 = vmatpush1.bf16.msra.mxu0 %v1442
    %1572 = vmatprep.subr.bf16.mxu0 %v1445
    %1573 = vmatpush1.bf16.msra.mxu0 %v1444
    %1574 = vmatprep.subr.bf16.mxu0 %v1447
    %1575 = vmatpush1.bf16.msra.mxu0 %v1446
    %1576 = vmatprep.subr.bf16.mxu0 %v1449
    %1577 = vmatpush1.bf16.msra.mxu0 %v1448
    %1578 = vmatprep.subr.bf16.mxu0 %v1451
    %1579 = vmatpush1.bf16.msra.mxu0 %v1450
    %1580 = vmatprep.subr.bf16.mxu0 %v1453
    %1581 = vmatpush1.bf16.msra.mxu0 %v1452
    %1582 = vmatprep.subr.bf16.mxu0 %v1455
    %1583 = vmatpush1.bf16.msra.mxu0 %v1454
    %1584 = vmatprep.subr.bf16.mxu0 %v1457
    %1585 = vmatpush1.bf16.msra.mxu0 %v1456
    %1586 = vmatprep.subr.bf16.mxu0 %v1459
    %1587 = vmatpush1.bf16.msra.mxu0 %v1458
    %1588 = vmatprep.subr.bf16.mxu0 %v1461
    %1589 = vmatpush1.bf16.msra.mxu0 %v1460
    %1590 = vmatprep.subr.bf16.mxu0 %v1463
    %1591 = vmatpush1.bf16.msra.mxu0 %v1462
    %1592 = vmatprep.mubr.bf16.mxu0 %v1173
    %1593 = vmatmul.mubr.bf16.gmra.mrb[0].mxu0 %v1172
    %v1594 = vpop.f32.mrb[0].mxu0
    %v1595 = vadd.f32 0.0, %v1594
    %v1596 = vpop.f32.mrb[0].mxu0
    %v1597 = vadd.f32 0.0, %v1596
    %v1598 = vpop.f32.mrb[0].mxu0
    %v1599 = vadd.f32 0.0, %v1598
    %v1600 = vpop.f32.mrb[0].mxu0
    %v1601 = vadd.f32 0.0, %v1600
    %1602 = vdwg.mxu0
    %1603 = vmatprep.subr.bf16.mxu0 %v1465
    %1604 = vmatpush1.bf16.msra.mxu0 %v1464
    %1605 = vmatprep.subr.bf16.mxu0 %v1467
    %1606 = vmatpush1.bf16.msra.mxu0 %v1466
    %1607 = vmatprep.subr.bf16.mxu0 %v1469
    %1608 = vmatpush1.bf16.msra.mxu0 %v1468
    %1609 = vmatprep.subr.bf16.mxu0 %v1471
    %1610 = vmatpush1.bf16.msra.mxu0 %v1470
    %1611 = vmatprep.subr.bf16.mxu0 %v1473
    %1612 = vmatpush1.bf16.msra.mxu0 %v1472
    %1613 = vmatprep.subr.bf16.mxu0 %v1475
    %1614 = vmatpush1.bf16.msra.mxu0 %v1474
    %1615 = vmatprep.subr.bf16.mxu0 %v1477
    %1616 = vmatpush1.bf16.msra.mxu0 %v1476
    %1617 = vmatprep.subr.bf16.mxu0 %v1479
    %1618 = vmatpush1.bf16.msra.mxu0 %v1478
    %1619 = vmatprep.subr.bf16.mxu0 %v1481
    %1620 = vmatpush1.bf16.msra.mxu0 %v1480
    %1621 = vmatprep.subr.bf16.mxu0 %v1483
    %1622 = vmatpush1.bf16.msra.mxu0 %v1482
    %1623 = vmatprep.subr.bf16.mxu0 %v1485
    %1624 = vmatpush1.bf16.msra.mxu0 %v1484
    %1625 = vmatprep.subr.bf16.mxu0 %v1487
    %1626 = vmatpush1.bf16.msra.mxu0 %v1486
    %1627 = vmatprep.subr.bf16.mxu0 %v1489
    %1628 = vmatpush1.bf16.msra.mxu0 %v1488
    %1629 = vmatprep.subr.bf16.mxu0 %v1491
    %1630 = vmatpush1.bf16.msra.mxu0 %v1490
    %1631 = vmatprep.subr.bf16.mxu0 %v1493
    %1632 = vmatpush1.bf16.msra.mxu0 %v1492
    %1633 = vmatprep.subr.bf16.mxu0 %v1495
    %1634 = vmatpush1.bf16.msra.mxu0 %v1494
    %1635 = vmatprep.mubr.bf16.mxu0 %v1175
    %1636 = vmatmul.mubr.bf16.gmra.mrb[0].mxu0 %v1174
    %v1637 = vpop.f32.mrb[0].mxu0
    %v1638 = vadd.f32 %v1595, %v1637
    %v1639 = vpop.f32.mrb[0].mxu0
    %v1640 = vadd.f32 %v1597, %v1639
    %v1641 = vpop.f32.mrb[0].mxu0
    %v1642 = vadd.f32 %v1599, %v1641
    %v1643 = vpop.f32.mrb[0].mxu0
    %v1644 = vadd.f32 %v1601, %v1643
    %1645 = vdwg.mxu0
    %v1646 = vld [vmem:[#allocation10] sm:$0xff]
    %v1647 = vld [vmem:[#allocation10 + $0x8] sm:$0xff]
    %v1648 = vld [vmem:[#allocation10 + $0x10] sm:$0xff]
    %v1649 = vld [vmem:[#allocation10 + $0x18] sm:$0xff]
    %v1650 = vadd.f32 %v1646, %v1638
    %v1651 = vadd.f32 %v1647, %v1640
    %v1652 = vadd.f32 %v1648, %v1642
    %v1653 = vadd.f32 %v1649, %v1644
    %1654 = vst [vmem:[#allocation10] sm:$0xff] %v1650
    %1655 = vst [vmem:[#allocation10 + $0x8] sm:$0xff] %v1651
    %1656 = vst [vmem:[#allocation10 + $0x10] sm:$0xff] %v1652
    %1657 = vst [vmem:[#allocation10 + $0x18] sm:$0xff] %v1653
    %v1658 = vld [vmem:[#allocation5 + $0x20] sm:$0xff]
    %v1659 = vld [vmem:[#allocation5 + $0x28] sm:$0xff]
    %v1660 = vld [vmem:[#allocation5 + $0x60] sm:$0xff]
    %v1661 = vld [vmem:[#allocation5 + $0x68] sm:$0xff]
    %v1662 = vld [vmem:[#allocation5 + $0xa0] sm:$0xff]
    %v1663 = vld [vmem:[#allocation5 + $0xa8] sm:$0xff]
    %v1664 = vld [vmem:[#allocation5 + $0xe0] sm:$0xff]
    %v1665 = vld [vmem:[#allocation5 + $0xe8] sm:$0xff]
    %v1666 = vld [vmem:[#allocation5 + $0x120] sm:$0xff]
    %v1667 = vld [vmem:[#allocation5 + $0x128] sm:$0xff]
    %v1668 = vld [vmem:[#allocation5 + $0x160] sm:$0xff]
    %v1669 = vld [vmem:[#allocation5 + $0x168] sm:$0xff]
    %v1670 = vld [vmem:[#allocation5 + $0x1a0] sm:$0xff]
    %v1671 = vld [vmem:[#allocation5 + $0x1a8] sm:$0xff]
    %v1672 = vld [vmem:[#allocation5 + $0x1e0] sm:$0xff]
    %v1673 = vld [vmem:[#allocation5 + $0x1e8] sm:$0xff]
    %v1674 = vld [vmem:[#allocation5 + $0x220] sm:$0xff]
    %v1675 = vld [vmem:[#allocation5 + $0x228] sm:$0xff]
    %v1676 = vld [vmem:[#allocation5 + $0x260] sm:$0xff]
    %v1677 = vld [vmem:[#allocation5 + $0x268] sm:$0xff]
    %v1678 = vld [vmem:[#allocation5 + $0x2a0] sm:$0xff]
    %v1679 = vld [vmem:[#allocation5 + $0x2a8] sm:$0xff]
    %v1680 = vld [vmem:[#allocation5 + $0x2e0] sm:$0xff]
    %v1681 = vld [vmem:[#allocation5 + $0x2e8] sm:$0xff]
    %v1682 = vld [vmem:[#allocation5 + $0x320] sm:$0xff]
    %v1683 = vld [vmem:[#allocation5 + $0x328] sm:$0xff]
    %v1684 = vld [vmem:[#allocation5 + $0x360] sm:$0xff]
    %v1685 = vld [vmem:[#allocation5 + $0x368] sm:$0xff]
    %v1686 = vld [vmem:[#allocation5 + $0x3a0] sm:$0xff]
    %v1687 = vld [vmem:[#allocation5 + $0x3a8] sm:$0xff]
    %v1688 = vld [vmem:[#allocation5 + $0x3e0] sm:$0xff]
    %v1689 = vld [vmem:[#allocation5 + $0x3e8] sm:$0xff]
    %v1690 = vld [vmem:[#allocation7 + $0x8] sm:$0xf]
    %v1692 = vlaneseq
    %v1693 = vshrl.u32 %v1692, 7
    %v1694 = vsub.s32 0, %v1693
    %v1695 = vrot.slane %v1690, %v1694
    %v1696 = vlaneseq
    %v1697 = vshrl.u32 %v1696, 7
    %v1698 = vsub.s32 1, %v1697
    %v1699 = vrot.slane %v1690, %v1698
    %v1700 = vlaneseq
    %v1701 = vshrl.u32 %v1700, 7
    %v1702 = vsub.s32 2, %v1701
    %v1703 = vrot.slane %v1690, %v1702
    %v1704 = vlaneseq
    %v1705 = vshrl.u32 %v1704, 7
    %v1706 = vsub.s32 3, %v1705
    %v1707 = vrot.slane %v1690, %v1706
    %v1744 = vunpack.c.l.b16 %v1658
    %v1745 = vunpack.c.h.b16 %v1658
    %v1746 = vunpack.c.l.b16 %v1659
    %v1747 = vunpack.c.h.b16 %v1659
    %v1748 = vunpack.c.l.b16 %v1660
    %v1749 = vunpack.c.h.b16 %v1660
    %v1750 = vunpack.c.l.b16 %v1661
    %v1751 = vunpack.c.h.b16 %v1661
    %v1752 = vunpack.c.l.b16 %v1662
    %v1753 = vunpack.c.h.b16 %v1662
    %v1754 = vunpack.c.l.b16 %v1663
    %v1755 = vunpack.c.h.b16 %v1663
    %v1756 = vunpack.c.l.b16 %v1664
    %v1757 = vunpack.c.h.b16 %v1664
    %v1758 = vunpack.c.l.b16 %v1665
    %v1759 = vunpack.c.h.b16 %v1665
    %v1760 = vunpack.c.l.b16 %v1666
    %v1761 = vunpack.c.h.b16 %v1666
    %v1762 = vunpack.c.l.b16 %v1667
    %v1763 = vunpack.c.h.b16 %v1667
    %v1764 = vunpack.c.l.b16 %v1668
    %v1765 = vunpack.c.h.b16 %v1668
    %v1766 = vunpack.c.l.b16 %v1669
    %v1767 = vunpack.c.h.b16 %v1669
    %v1768 = vunpack.c.l.b16 %v1670
    %v1769 = vunpack.c.h.b16 %v1670
    %v1770 = vunpack.c.l.b16 %v1671
    %v1771 = vunpack.c.h.b16 %v1671
    %v1772 = vunpack.c.l.b16 %v1672
    %v1773 = vunpack.c.h.b16 %v1672
    %v1774 = vunpack.c.l.b16 %v1673
    %v1775 = vunpack.c.h.b16 %v1673
    %v1776 = vunpack.c.l.b16 %v1674
    %v1777 = vunpack.c.h.b16 %v1674
    %v1778 = vunpack.c.l.b16 %v1675
    %v1779 = vunpack.c.h.b16 %v1675
    %v1780 = vunpack.c.l.b16 %v1676
    %v1781 = vunpack.c.h.b16 %v1676
    %v1782 = vunpack.c.l.b16 %v1677
    %v1783 = vunpack.c.h.b16 %v1677
    %v1784 = vunpack.c.l.b16 %v1678
    %v1785 = vunpack.c.h.b16 %v1678
    %v1786 = vunpack.c.l.b16 %v1679
    %v1787 = vunpack.c.h.b16 %v1679
    %v1788 = vunpack.c.l.b16 %v1680
    %v1789 = vunpack.c.h.b16 %v1680
    %v1790 = vunpack.c.l.b16 %v1681
    %v1791 = vunpack.c.h.b16 %v1681
    %v1792 = vunpack.c.l.b16 %v1682
    %v1793 = vunpack.c.h.b16 %v1682
    %v1794 = vunpack.c.l.b16 %v1683
    %v1795 = vunpack.c.h.b16 %v1683
    %v1796 = vunpack.c.l.b16 %v1684
    %v1797 = vunpack.c.h.b16 %v1684
    %v1798 = vunpack.c.l.b16 %v1685
    %v1799 = vunpack.c.h.b16 %v1685
    %v1800 = vunpack.c.l.b16 %v1686
    %v1801 = vunpack.c.h.b16 %v1686
    %v1802 = vunpack.c.l.b16 %v1687
    %v1803 = vunpack.c.h.b16 %v1687
    %v1804 = vunpack.c.l.b16 %v1688
    %v1805 = vunpack.c.h.b16 %v1688
    %v1806 = vunpack.c.l.b16 %v1689
    %v1807 = vunpack.c.h.b16 %v1689
    %v1808 = vpack.c.b16 %v1748, %v1744
    %v1809 = vpack.c.b16 %v1749, %v1745
    %v1810 = vpack.c.b16 %v1750, %v1746
    %v1811 = vpack.c.b16 %v1751, %v1747
    %v1812 = vpack.c.b16 %v1756, %v1752
    %v1813 = vpack.c.b16 %v1757, %v1753
    %v1814 = vpack.c.b16 %v1758, %v1754
    %v1815 = vpack.c.b16 %v1759, %v1755
    %v1816 = vpack.c.b16 %v1764, %v1760
    %v1817 = vpack.c.b16 %v1765, %v1761
    %v1818 = vpack.c.b16 %v1766, %v1762
    %v1819 = vpack.c.b16 %v1767, %v1763
    %v1820 = vpack.c.b16 %v1772, %v1768
    %v1821 = vpack.c.b16 %v1773, %v1769
    %v1822 = vpack.c.b16 %v1774, %v1770
    %v1823 = vpack.c.b16 %v1775, %v1771
    %v1824 = vpack.c.b16 %v1780, %v1776
    %v1825 = vpack.c.b16 %v1781, %v1777
    %v1826 = vpack.c.b16 %v1782, %v1778
    %v1827 = vpack.c.b16 %v1783, %v1779
    %v1828 = vpack.c.b16 %v1788, %v1784
    %v1829 = vpack.c.b16 %v1789, %v1785
    %v1830 = vpack.c.b16 %v1790, %v1786
    %v1831 = vpack.c.b16 %v1791, %v1787
    %v1832 = vpack.c.b16 %v1796, %v1792
    %v1833 = vpack.c.b16 %v1797, %v1793
    %v1834 = vpack.c.b16 %v1798, %v1794
    %v1835 = vpack.c.b16 %v1799, %v1795
    %v1836 = vpack.c.b16 %v1804, %v1800
    %v1837 = vpack.c.b16 %v1805, %v1801
    %v1838 = vpack.c.b16 %v1806, %v1802
    %v1839 = vpack.c.b16 %v1807, %v1803
    %1872 = vmatprep.subr.bf16.mxu0 %v1809
    %1873 = vmatpush1.bf16.msra.mxu0 %v1808
    %1874 = vmatprep.subr.bf16.mxu0 %v1813
    %1875 = vmatpush1.bf16.msra.mxu0 %v1812
    %1876 = vmatprep.subr.bf16.mxu0 %v1817
    %1877 = vmatpush1.bf16.msra.mxu0 %v1816
    %1878 = vmatprep.subr.bf16.mxu0 %v1821
    %1879 = vmatpush1.bf16.msra.mxu0 %v1820
    %1880 = vmatprep.subr.bf16.mxu0 %v1825
    %1881 = vmatpush1.bf16.msra.mxu0 %v1824
    %1882 = vmatprep.subr.bf16.mxu0 %v1829
    %1883 = vmatpush1.bf16.msra.mxu0 %v1828
    %1884 = vmatprep.subr.bf16.mxu0 %v1833
    %1885 = vmatpush1.bf16.msra.mxu0 %v1832
    %1886 = vmatprep.subr.bf16.mxu0 %v1837
    %1887 = vmatpush1.bf16.msra.mxu0 %v1836
    %1888 = vmatprep.subr.bf16.mxu0 0
    %1889 = vmatpush1.bf16.msra.mxu0 0
    %1890 = vmatprep.subr.bf16.mxu0 0
    %1891 = vmatpush1.bf16.msra.mxu0 0
    %1892 = vmatprep.subr.bf16.mxu0 0
    %1893 = vmatpush1.bf16.msra.mxu0 0
    %1894 = vmatprep.subr.bf16.mxu0 0
    %1895 = vmatpush1.bf16.msra.mxu0 0
    %1896 = vmatprep.subr.bf16.mxu0 0
    %1897 = vmatpush1.bf16.msra.mxu0 0
    %1898 = vmatprep.subr.bf16.mxu0 0
    %1899 = vmatpush1.bf16.msra.mxu0 0
    %1900 = vmatprep.subr.bf16.mxu0 0
    %1901 = vmatpush1.bf16.msra.mxu0 0
    %1902 = vmatprep.subr.bf16.mxu0 0
    %1903 = vmatpush1.bf16.msra.mxu0 0
    %1904 = vmatprep.mubr.bf16.mxu0 0
    %1905 = vmatmul.mubr.bf16.gmra.mrb[0].mxu0 %v77
    %v1906 = vpop.f32.mrb[0].mxu0
    %v1907 = vadd.f32 %v1695, %v1906
    %v1908 = vpop.f32.mrb[0].mxu0
    %v1909 = vadd.f32 %v1699, %v1908
    %v1910 = vpop.f32.mrb[0].mxu0
    %v1911 = vadd.f32 %v1695, %v1910
    %v1912 = vpop.f32.mrb[0].mxu0
    %v1913 = vadd.f32 %v1699, %v1912
    %1914 = vdwg.mxu0
    %1915 = vmatprep.subr.bf16.mxu0 %v1811
    %1916 = vmatpush1.bf16.msra.mxu0 %v1810
    %1917 = vmatprep.subr.bf16.mxu0 %v1815
    %1918 = vmatpush1.bf16.msra.mxu0 %v1814
    %1919 = vmatprep.subr.bf16.mxu0 %v1819
    %1920 = vmatpush1.bf16.msra.mxu0 %v1818
    %1921 = vmatprep.subr.bf16.mxu0 %v1823
    %1922 = vmatpush1.bf16.msra.mxu0 %v1822
    %1923 = vmatprep.subr.bf16.mxu0 %v1827
    %1924 = vmatpush1.bf16.msra.mxu0 %v1826
    %1925 = vmatprep.subr.bf16.mxu0 %v1831
    %1926 = vmatpush1.bf16.msra.mxu0 %v1830
    %1927 = vmatprep.subr.bf16.mxu0 %v1835
    %1928 = vmatpush1.bf16.msra.mxu0 %v1834
    %1929 = vmatprep.subr.bf16.mxu0 %v1839
    %1930 = vmatpush1.bf16.msra.mxu0 %v1838
    %1931 = vmatprep.subr.bf16.mxu0 0
    %1932 = vmatpush1.bf16.msra.mxu0 0
    %1933 = vmatprep.subr.bf16.mxu0 0
    %1934 = vmatpush1.bf16.msra.mxu0 0
    %1935 = vmatprep.subr.bf16.mxu0 0
    %1936 = vmatpush1.bf16.msra.mxu0 0
    %1937 = vmatprep.subr.bf16.mxu0 0
    %1938 = vmatpush1.bf16.msra.mxu0 0
    %1939 = vmatprep.subr.bf16.mxu0 0
    %1940 = vmatpush1.bf16.msra.mxu0 0
    %1941 = vmatprep.subr.bf16.mxu0 0
    %1942 = vmatpush1.bf16.msra.mxu0 0
    %1943 = vmatprep.subr.bf16.mxu0 0
    %1944 = vmatpush1.bf16.msra.mxu0 0
    %1945 = vmatprep.subr.bf16.mxu0 0
    %1946 = vmatpush1.bf16.msra.mxu0 0
    %1947 = vmatprep.mubr.bf16.mxu0 0
    %1948 = vmatmul.mubr.bf16.gmra.mrb[0].mxu0 %v77
    %v1949 = vpop.f32.mrb[0].mxu0
    %v1950 = vadd.f32 %v1703, %v1949
    %v1951 = vpop.f32.mrb[0].mxu0
    %v1952 = vadd.f32 %v1707, %v1951
    %v1953 = vpop.f32.mrb[0].mxu0
    %v1954 = vadd.f32 %v1703, %v1953
    %v1955 = vpop.f32.mrb[0].mxu0
    %v1956 = vadd.f32 %v1707, %v1955
    %1957 = vdwg.mxu0
    %v1958 = vmax.f32 %v1907, 0.0
    %v1959 = vmax.f32 %v1909, 0.0
    %v1960 = vmax.f32 %v1950, 0.0
    %v1961 = vmax.f32 %v1952, 0.0
    %v1962 = vmax.f32 %v1911, 0.0
    %v1963 = vmax.f32 %v1913, 0.0
    %v1964 = vmax.f32 %v1954, 0.0
    %v1965 = vmax.f32 %v1956, 0.0
    %v1966 = vpack.c.bf16 %v1962, %v1958
    %v1967 = vpack.c.bf16 %v1963, %v1959
    %v1968 = vpack.c.bf16 %v1964, %v1960
    %v1969 = vpack.c.bf16 %v1965, %v1961
    %v1970 = vld [vmem:[#allocation8 + $0x400] sm:$0xff]
    %v1971 = vld [vmem:[#allocation8 + $0x408] sm:$0xff]
    %v1972 = vld [vmem:[#allocation8 + $0x410] sm:$0xff]
    %v1973 = vld [vmem:[#allocation8 + $0x418] sm:$0xff]
    %v1974 = vld [vmem:[#allocation8 + $0x420] sm:$0xff]
    %v1975 = vld [vmem:[#allocation8 + $0x428] sm:$0xff]
    %v1976 = vld [vmem:[#allocation8 + $0x430] sm:$0xff]
    %v1977 = vld [vmem:[#allocation8 + $0x438] sm:$0xff]
    %v1978 = vld [vmem:[#allocation8 + $0x440] sm:$0xff]
    %v1979 = vld [vmem:[#allocation8 + $0x448] sm:$0xff]
    %v1980 = vld [vmem:[#allocation8 + $0x450] sm:$0xff]
    %v1981 = vld [vmem:[#allocation8 + $0x458] sm:$0xff]
    %v1982 = vld [vmem:[#allocation8 + $0x460] sm:$0xff]
    %v1983 = vld [vmem:[#allocation8 + $0x468] sm:$0xff]
    %v1984 = vld [vmem:[#allocation8 + $0x470] sm:$0xff]
    %v1985 = vld [vmem:[#allocation8 + $0x478] sm:$0xff]
    %v1986 = vld [vmem:[#allocation8 + $0x480] sm:$0xff]
    %v1987 = vld [vmem:[#allocation8 + $0x488] sm:$0xff]
    %v1988 = vld [vmem:[#allocation8 + $0x490] sm:$0xff]
    %v1989 = vld [vmem:[#allocation8 + $0x498] sm:$0xff]
    %v1990 = vld [vmem:[#allocation8 + $0x4a0] sm:$0xff]
    %v1991 = vld [vmem:[#allocation8 + $0x4a8] sm:$0xff]
    %v1992 = vld [vmem:[#allocation8 + $0x4b0] sm:$0xff]
    %v1993 = vld [vmem:[#allocation8 + $0x4b8] sm:$0xff]
    %v1994 = vld [vmem:[#allocation8 + $0x4c0] sm:$0xff]
    %v1995 = vld [vmem:[#allocation8 + $0x4c8] sm:$0xff]
    %v1996 = vld [vmem:[#allocation8 + $0x4d0] sm:$0xff]
    %v1997 = vld [vmem:[#allocation8 + $0x4d8] sm:$0xff]
    %v1998 = vld [vmem:[#allocation8 + $0x4e0] sm:$0xff]
    %v1999 = vld [vmem:[#allocation8 + $0x4e8] sm:$0xff]
    %v2000 = vld [vmem:[#allocation8 + $0x4f0] sm:$0xff]
    %v2001 = vld [vmem:[#allocation8 + $0x4f8] sm:$0xff]
    %v2002 = vld [vmem:[#allocation8 + $0x500] sm:$0xff]
    %v2003 = vld [vmem:[#allocation8 + $0x508] sm:$0xff]
    %v2004 = vld [vmem:[#allocation8 + $0x510] sm:$0xff]
    %v2005 = vld [vmem:[#allocation8 + $0x518] sm:$0xff]
    %v2006 = vld [vmem:[#allocation8 + $0x520] sm:$0xff]
    %v2007 = vld [vmem:[#allocation8 + $0x528] sm:$0xff]
    %v2008 = vld [vmem:[#allocation8 + $0x530] sm:$0xff]
    %v2009 = vld [vmem:[#allocation8 + $0x538] sm:$0xff]
    %v2010 = vld [vmem:[#allocation8 + $0x540] sm:$0xff]
    %v2011 = vld [vmem:[#allocation8 + $0x548] sm:$0xff]
    %v2012 = vld [vmem:[#allocation8 + $0x550] sm:$0xff]
    %v2013 = vld [vmem:[#allocation8 + $0x558] sm:$0xff]
    %v2014 = vld [vmem:[#allocation8 + $0x560] sm:$0xff]
    %v2015 = vld [vmem:[#allocation8 + $0x568] sm:$0xff]
    %v2016 = vld [vmem:[#allocation8 + $0x570] sm:$0xff]
    %v2017 = vld [vmem:[#allocation8 + $0x578] sm:$0xff]
    %v2018 = vld [vmem:[#allocation8 + $0x580] sm:$0xff]
    %v2019 = vld [vmem:[#allocation8 + $0x588] sm:$0xff]
    %v2020 = vld [vmem:[#allocation8 + $0x590] sm:$0xff]
    %v2021 = vld [vmem:[#allocation8 + $0x598] sm:$0xff]
    %v2022 = vld [vmem:[#allocation8 + $0x5a0] sm:$0xff]
    %v2023 = vld [vmem:[#allocation8 + $0x5a8] sm:$0xff]
    %v2024 = vld [vmem:[#allocation8 + $0x5b0] sm:$0xff]
    %v2025 = vld [vmem:[#allocation8 + $0x5b8] sm:$0xff]
    %v2026 = vld [vmem:[#allocation8 + $0x5c0] sm:$0xff]
    %v2027 = vld [vmem:[#allocation8 + $0x5c8] sm:$0xff]
    %v2028 = vld [vmem:[#allocation8 + $0x5d0] sm:$0xff]
    %v2029 = vld [vmem:[#allocation8 + $0x5d8] sm:$0xff]
    %v2030 = vld [vmem:[#allocation8 + $0x5e0] sm:$0xff]
    %v2031 = vld [vmem:[#allocation8 + $0x5e8] sm:$0xff]
    %v2032 = vld [vmem:[#allocation8 + $0x5f0] sm:$0xff]
    %v2033 = vld [vmem:[#allocation8 + $0x5f8] sm:$0xff]
    %v2098 = vunpack.c.l.b16 %v1970
    %v2099 = vunpack.c.h.b16 %v1970
    %v2100 = vunpack.c.l.b16 %v1971
    %v2101 = vunpack.c.h.b16 %v1971
    %v2102 = vunpack.c.l.b16 %v1972
    %v2103 = vunpack.c.h.b16 %v1972
    %v2104 = vunpack.c.l.b16 %v1973
    %v2105 = vunpack.c.h.b16 %v1973
    %v2106 = vunpack.c.l.b16 %v1974
    %v2107 = vunpack.c.h.b16 %v1974
    %v2108 = vunpack.c.l.b16 %v1975
    %v2109 = vunpack.c.h.b16 %v1975
    %v2110 = vunpack.c.l.b16 %v1976
    %v2111 = vunpack.c.h.b16 %v1976
    %v2112 = vunpack.c.l.b16 %v1977
    %v2113 = vunpack.c.h.b16 %v1977
    %v2114 = vunpack.c.l.b16 %v1978
    %v2115 = vunpack.c.h.b16 %v1978
    %v2116 = vunpack.c.l.b16 %v1979
    %v2117 = vunpack.c.h.b16 %v1979
    %v2118 = vunpack.c.l.b16 %v1980
    %v2119 = vunpack.c.h.b16 %v1980
    %v2120 = vunpack.c.l.b16 %v1981
    %v2121 = vunpack.c.h.b16 %v1981
    %v2122 = vunpack.c.l.b16 %v1982
    %v2123 = vunpack.c.h.b16 %v1982
    %v2124 = vunpack.c.l.b16 %v1983
    %v2125 = vunpack.c.h.b16 %v1983
    %v2126 = vunpack.c.l.b16 %v1984
    %v2127 = vunpack.c.h.b16 %v1984
    %v2128 = vunpack.c.l.b16 %v1985
    %v2129 = vunpack.c.h.b16 %v1985
    %v2130 = vunpack.c.l.b16 %v1986
    %v2131 = vunpack.c.h.b16 %v1986
    %v2132 = vunpack.c.l.b16 %v1987
    %v2133 = vunpack.c.h.b16 %v1987
    %v2134 = vunpack.c.l.b16 %v1988
    %v2135 = vunpack.c.h.b16 %v1988
    %v2136 = vunpack.c.l.b16 %v1989
    %v2137 = vunpack.c.h.b16 %v1989
    %v2138 = vunpack.c.l.b16 %v1990
    %v2139 = vunpack.c.h.b16 %v1990
    %v2140 = vunpack.c.l.b16 %v1991
    %v2141 = vunpack.c.h.b16 %v1991
    %v2142 = vunpack.c.l.b16 %v1992
    %v2143 = vunpack.c.h.b16 %v1992
    %v2144 = vunpack.c.l.b16 %v1993
    %v2145 = vunpack.c.h.b16 %v1993
    %v2146 = vunpack.c.l.b16 %v1994
    %v2147 = vunpack.c.h.b16 %v1994
    %v2148 = vunpack.c.l.b16 %v1995
    %v2149 = vunpack.c.h.b16 %v1995
    %v2150 = vunpack.c.l.b16 %v1996
    %v2151 = vunpack.c.h.b16 %v1996
    %v2152 = vunpack.c.l.b16 %v1997
    %v2153 = vunpack.c.h.b16 %v1997
    %v2154 = vunpack.c.l.b16 %v1998
    %v2155 = vunpack.c.h.b16 %v1998
    %v2156 = vunpack.c.l.b16 %v1999
    %v2157 = vunpack.c.h.b16 %v1999
    %v2158 = vunpack.c.l.b16 %v2000
    %v2159 = vunpack.c.h.b16 %v2000
    %v2160 = vunpack.c.l.b16 %v2001
    %v2161 = vunpack.c.h.b16 %v2001
    %v2162 = vunpack.c.l.b16 %v2002
    %v2163 = vunpack.c.h.b16 %v2002
    %v2164 = vunpack.c.l.b16 %v2003
    %v2165 = vunpack.c.h.b16 %v2003
    %v2166 = vunpack.c.l.b16 %v2004
    %v2167 = vunpack.c.h.b16 %v2004
    %v2168 = vunpack.c.l.b16 %v2005
    %v2169 = vunpack.c.h.b16 %v2005
    %v2170 = vunpack.c.l.b16 %v2006
    %v2171 = vunpack.c.h.b16 %v2006
    %v2172 = vunpack.c.l.b16 %v2007
    %v2173 = vunpack.c.h.b16 %v2007
    %v2174 = vunpack.c.l.b16 %v2008
    %v2175 = vunpack.c.h.b16 %v2008
    %v2176 = vunpack.c.l.b16 %v2009
    %v2177 = vunpack.c.h.b16 %v2009
    %v2178 = vunpack.c.l.b16 %v2010
    %v2179 = vunpack.c.h.b16 %v2010
    %v2180 = vunpack.c.l.b16 %v2011
    %v2181 = vunpack.c.h.b16 %v2011
    %v2182 = vunpack.c.l.b16 %v2012
    %v2183 = vunpack.c.h.b16 %v2012
    %v2184 = vunpack.c.l.b16 %v2013
    %v2185 = vunpack.c.h.b16 %v2013
    %v2186 = vunpack.c.l.b16 %v2014
    %v2187 = vunpack.c.h.b16 %v2014
    %v2188 = vunpack.c.l.b16 %v2015
    %v2189 = vunpack.c.h.b16 %v2015
    %v2190 = vunpack.c.l.b16 %v2016
    %v2191 = vunpack.c.h.b16 %v2016
    %v2192 = vunpack.c.l.b16 %v2017
    %v2193 = vunpack.c.h.b16 %v2017
    %v2194 = vunpack.c.l.b16 %v2018
    %v2195 = vunpack.c.h.b16 %v2018
    %v2196 = vunpack.c.l.b16 %v2019
    %v2197 = vunpack.c.h.b16 %v2019
    %v2198 = vunpack.c.l.b16 %v2020
    %v2199 = vunpack.c.h.b16 %v2020
    %v2200 = vunpack.c.l.b16 %v2021
    %v2201 = vunpack.c.h.b16 %v2021
    %v2202 = vunpack.c.l.b16 %v2022
    %v2203 = vunpack.c.h.b16 %v2022
    %v2204 = vunpack.c.l.b16 %v2023
    %v2205 = vunpack.c.h.b16 %v2023
    %v2206 = vunpack.c.l.b16 %v2024
    %v2207 = vunpack.c.h.b16 %v2024
    %v2208 = vunpack.c.l.b16 %v2025
    %v2209 = vunpack.c.h.b16 %v2025
    %v2210 = vunpack.c.l.b16 %v2026
    %v2211 = vunpack.c.h.b16 %v2026
    %v2212 = vunpack.c.l.b16 %v2027
    %v2213 = vunpack.c.h.b16 %v2027
    %v2214 = vunpack.c.l.b16 %v2028
    %v2215 = vunpack.c.h.b16 %v2028
    %v2216 = vunpack.c.l.b16 %v2029
    %v2217 = vunpack.c.h.b16 %v2029
    %v2218 = vunpack.c.l.b16 %v2030
    %v2219 = vunpack.c.h.b16 %v2030
    %v2220 = vunpack.c.l.b16 %v2031
    %v2221 = vunpack.c.h.b16 %v2031
    %v2222 = vunpack.c.l.b16 %v2032
    %v2223 = vunpack.c.h.b16 %v2032
    %v2224 = vunpack.c.l.b16 %v2033
    %v2225 = vunpack.c.h.b16 %v2033
    %v2226 = vpack.c.b16 %v2100, %v2098
    %v2227 = vpack.c.b16 %v2101, %v2099
    %v2228 = vpack.c.b16 %v2104, %v2102
    %v2229 = vpack.c.b16 %v2105, %v2103
    %v2230 = vpack.c.b16 %v2108, %v2106
    %v2231 = vpack.c.b16 %v2109, %v2107
    %v2232 = vpack.c.b16 %v2112, %v2110
    %v2233 = vpack.c.b16 %v2113, %v2111
    %v2234 = vpack.c.b16 %v2116, %v2114
    %v2235 = vpack.c.b16 %v2117, %v2115
    %v2236 = vpack.c.b16 %v2120, %v2118
    %v2237 = vpack.c.b16 %v2121, %v2119
    %v2238 = vpack.c.b16 %v2124, %v2122
    %v2239 = vpack.c.b16 %v2125, %v2123
    %v2240 = vpack.c.b16 %v2128, %v2126
    %v2241 = vpack.c.b16 %v2129, %v2127
    %v2242 = vpack.c.b16 %v2132, %v2130
    %v2243 = vpack.c.b16 %v2133, %v2131
    %v2244 = vpack.c.b16 %v2136, %v2134
    %v2245 = vpack.c.b16 %v2137, %v2135
    %v2246 = vpack.c.b16 %v2140, %v2138
    %v2247 = vpack.c.b16 %v2141, %v2139
    %v2248 = vpack.c.b16 %v2144, %v2142
    %v2249 = vpack.c.b16 %v2145, %v2143
    %v2250 = vpack.c.b16 %v2148, %v2146
    %v2251 = vpack.c.b16 %v2149, %v2147
    %v2252 = vpack.c.b16 %v2152, %v2150
    %v2253 = vpack.c.b16 %v2153, %v2151
    %v2254 = vpack.c.b16 %v2156, %v2154
    %v2255 = vpack.c.b16 %v2157, %v2155
    %v2256 = vpack.c.b16 %v2160, %v2158
    %v2257 = vpack.c.b16 %v2161, %v2159
    %v2258 = vpack.c.b16 %v2164, %v2162
    %v2259 = vpack.c.b16 %v2165, %v2163
    %v2260 = vpack.c.b16 %v2168, %v2166
    %v2261 = vpack.c.b16 %v2169, %v2167
    %v2262 = vpack.c.b16 %v2172, %v2170
    %v2263 = vpack.c.b16 %v2173, %v2171
    %v2264 = vpack.c.b16 %v2176, %v2174
    %v2265 = vpack.c.b16 %v2177, %v2175
    %v2266 = vpack.c.b16 %v2180, %v2178
    %v2267 = vpack.c.b16 %v2181, %v2179
    %v2268 = vpack.c.b16 %v2184, %v2182
    %v2269 = vpack.c.b16 %v2185, %v2183
    %v2270 = vpack.c.b16 %v2188, %v2186
    %v2271 = vpack.c.b16 %v2189, %v2187
    %v2272 = vpack.c.b16 %v2192, %v2190
    %v2273 = vpack.c.b16 %v2193, %v2191
    %v2274 = vpack.c.b16 %v2196, %v2194
    %v2275 = vpack.c.b16 %v2197, %v2195
    %v2276 = vpack.c.b16 %v2200, %v2198
    %v2277 = vpack.c.b16 %v2201, %v2199
    %v2278 = vpack.c.b16 %v2204, %v2202
    %v2279 = vpack.c.b16 %v2205, %v2203
    %v2280 = vpack.c.b16 %v2208, %v2206
    %v2281 = vpack.c.b16 %v2209, %v2207
    %v2282 = vpack.c.b16 %v2212, %v2210
    %v2283 = vpack.c.b16 %v2213, %v2211
    %v2284 = vpack.c.b16 %v2216, %v2214
    %v2285 = vpack.c.b16 %v2217, %v2215
    %v2286 = vpack.c.b16 %v2220, %v2218
    %v2287 = vpack.c.b16 %v2221, %v2219
    %v2288 = vpack.c.b16 %v2224, %v2222
    %v2289 = vpack.c.b16 %v2225, %v2223
    %2354 = vmatprep.subr.bf16.mxu0 %v2227
    %2355 = vmatpush1.bf16.msra.mxu0 %v2226
    %2356 = vmatprep.subr.bf16.mxu0 %v2229
    %2357 = vmatpush1.bf16.msra.mxu0 %v2228
    %2358 = vmatprep.subr.bf16.mxu0 %v2231
    %2359 = vmatpush1.bf16.msra.mxu0 %v2230
    %2360 = vmatprep.subr.bf16.mxu0 %v2233
    %2361 = vmatpush1.bf16.msra.mxu0 %v2232
    %2362 = vmatprep.subr.bf16.mxu0 %v2235
    %2363 = vmatpush1.bf16.msra.mxu0 %v2234
    %2364 = vmatprep.subr.bf16.mxu0 %v2237
    %2365 = vmatpush1.bf16.msra.mxu0 %v2236
    %2366 = vmatprep.subr.bf16.mxu0 %v2239
    %2367 = vmatpush1.bf16.msra.mxu0 %v2238
    %2368 = vmatprep.subr.bf16.mxu0 %v2241
    %2369 = vmatpush1.bf16.msra.mxu0 %v2240
    %2370 = vmatprep.subr.bf16.mxu0 %v2243
    %2371 = vmatpush1.bf16.msra.mxu0 %v2242
    %2372 = vmatprep.subr.bf16.mxu0 %v2245
    %2373 = vmatpush1.bf16.msra.mxu0 %v2244
    %2374 = vmatprep.subr.bf16.mxu0 %v2247
    %2375 = vmatpush1.bf16.msra.mxu0 %v2246
    %2376 = vmatprep.subr.bf16.mxu0 %v2249
    %2377 = vmatpush1.bf16.msra.mxu0 %v2248
    %2378 = vmatprep.subr.bf16.mxu0 %v2251
    %2379 = vmatpush1.bf16.msra.mxu0 %v2250
    %2380 = vmatprep.subr.bf16.mxu0 %v2253
    %2381 = vmatpush1.bf16.msra.mxu0 %v2252
    %2382 = vmatprep.subr.bf16.mxu0 %v2255
    %2383 = vmatpush1.bf16.msra.mxu0 %v2254
    %2384 = vmatprep.subr.bf16.mxu0 %v2257
    %2385 = vmatpush1.bf16.msra.mxu0 %v2256
    %2386 = vmatprep.mubr.bf16.mxu0 %v1967
    %2387 = vmatmul.mubr.bf16.gmra.mrb[0].mxu0 %v1966
    %v2388 = vpop.f32.mrb[0].mxu0
    %v2389 = vadd.f32 0.0, %v2388
    %v2390 = vpop.f32.mrb[0].mxu0
    %v2391 = vadd.f32 0.0, %v2390
    %v2392 = vpop.f32.mrb[0].mxu0
    %v2393 = vadd.f32 0.0, %v2392
    %v2394 = vpop.f32.mrb[0].mxu0
    %v2395 = vadd.f32 0.0, %v2394
    %2396 = vdwg.mxu0
    %2397 = vmatprep.subr.bf16.mxu0 %v2259
    %2398 = vmatpush1.bf16.msra.mxu0 %v2258
    %2399 = vmatprep.subr.bf16.mxu0 %v2261
    %2400 = vmatpush1.bf16.msra.mxu0 %v2260
    %2401 = vmatprep.subr.bf16.mxu0 %v2263
    %2402 = vmatpush1.bf16.msra.mxu0 %v2262
    %2403 = vmatprep.subr.bf16.mxu0 %v2265
    %2404 = vmatpush1.bf16.msra.mxu0 %v2264
    %2405 = vmatprep.subr.bf16.mxu0 %v2267
    %2406 = vmatpush1.bf16.msra.mxu0 %v2266
    %2407 = vmatprep.subr.bf16.mxu0 %v2269
    %2408 = vmatpush1.bf16.msra.mxu0 %v2268
    %2409 = vmatprep.subr.bf16.mxu0 %v2271
    %2410 = vmatpush1.bf16.msra.mxu0 %v2270
    %2411 = vmatprep.subr.bf16.mxu0 %v2273
    %2412 = vmatpush1.bf16.msra.mxu0 %v2272
    %2413 = vmatprep.subr.bf16.mxu0 %v2275
    %2414 = vmatpush1.bf16.msra.mxu0 %v2274
    %2415 = vmatprep.subr.bf16.mxu0 %v2277
    %2416 = vmatpush1.bf16.msra.mxu0 %v2276
    %2417 = vmatprep.subr.bf16.mxu0 %v2279
    %2418 = vmatpush1.bf16.msra.mxu0 %v2278
    %2419 = vmatprep.subr.bf16.mxu0 %v2281
    %2420 = vmatpush1.bf16.msra.mxu0 %v2280
    %2421 = vmatprep.subr.bf16.mxu0 %v2283
    %2422 = vmatpush1.bf16.msra.mxu0 %v2282
    %2423 = vmatprep.subr.bf16.mxu0 %v2285
    %2424 = vmatpush1.bf16.msra.mxu0 %v2284
    %2425 = vmatprep.subr.bf16.mxu0 %v2287
    %2426 = vmatpush1.bf16.msra.mxu0 %v2286
    %2427 = vmatprep.subr.bf16.mxu0 %v2289
    %2428 = vmatpush1.bf16.msra.mxu0 %v2288
    %2429 = vmatprep.mubr.bf16.mxu0 %v1969
    %2430 = vmatmul.mubr.bf16.gmra.mrb[0].mxu0 %v1968
    %v2431 = vpop.f32.mrb[0].mxu0
    %v2432 = vadd.f32 %v2389, %v2431
    %v2433 = vpop.f32.mrb[0].mxu0
    %v2434 = vadd.f32 %v2391, %v2433
    %v2435 = vpop.f32.mrb[0].mxu0
    %v2436 = vadd.f32 %v2393, %v2435
    %v2437 = vpop.f32.mrb[0].mxu0
    %v2438 = vadd.f32 %v2395, %v2437
    %2439 = vdwg.mxu0
    %v2440 = vld [vmem:[#allocation10] sm:$0xff]
    %v2441 = vld [vmem:[#allocation10 + $0x8] sm:$0xff]
    %v2442 = vld [vmem:[#allocation10 + $0x10] sm:$0xff]
    %v2443 = vld [vmem:[#allocation10 + $0x18] sm:$0xff]
    %v2444 = vadd.f32 %v2440, %v2432
    %v2445 = vadd.f32 %v2441, %v2434
    %v2446 = vadd.f32 %v2442, %v2436
    %v2447 = vadd.f32 %v2443, %v2438
    %2448 = vst [vmem:[#allocation10] sm:$0xff] %v2444
    %2449 = vst [vmem:[#allocation10 + $0x8] sm:$0xff] %v2445
    %2450 = vst [vmem:[#allocation10 + $0x10] sm:$0xff] %v2446
    %2451 = vst [vmem:[#allocation10 + $0x18] sm:$0xff] %v2447
    %v2452 = vld [vmem:[#allocation5 + $0x30] sm:$0xff]
    %v2453 = vld [vmem:[#allocation5 + $0x38] sm:$0xff]
    %v2454 = vld [vmem:[#allocation5 + $0x70] sm:$0xff]
    %v2455 = vld [vmem:[#allocation5 + $0x78] sm:$0xff]
    %v2456 = vld [vmem:[#allocation5 + $0xb0] sm:$0xff]
    %v2457 = vld [vmem:[#allocation5 + $0xb8] sm:$0xff]
    %v2458 = vld [vmem:[#allocation5 + $0xf0] sm:$0xff]
    %v2459 = vld [vmem:[#allocation5 + $0xf8] sm:$0xff]
    %v2460 = vld [vmem:[#allocation5 + $0x130] sm:$0xff]
    %v2461 = vld [vmem:[#allocation5 + $0x138] sm:$0xff]
    %v2462 = vld [vmem:[#allocation5 + $0x170] sm:$0xff]
    %v2463 = vld [vmem:[#allocation5 + $0x178] sm:$0xff]
    %v2464 = vld [vmem:[#allocation5 + $0x1b0] sm:$0xff]
    %v2465 = vld [vmem:[#allocation5 + $0x1b8] sm:$0xff]
    %v2466 = vld [vmem:[#allocation5 + $0x1f0] sm:$0xff]
    %v2467 = vld [vmem:[#allocation5 + $0x1f8] sm:$0xff]
    %v2468 = vld [vmem:[#allocation5 + $0x230] sm:$0xff]
    %v2469 = vld [vmem:[#allocation5 + $0x238] sm:$0xff]
    %v2470 = vld [vmem:[#allocation5 + $0x270] sm:$0xff]
    %v2471 = vld [vmem:[#allocation5 + $0x278] sm:$0xff]
    %v2472 = vld [vmem:[#allocation5 + $0x2b0] sm:$0xff]
    %v2473 = vld [vmem:[#allocation5 + $0x2b8] sm:$0xff]
    %v2474 = vld [vmem:[#allocation5 + $0x2f0] sm:$0xff]
    %v2475 = vld [vmem:[#allocation5 + $0x2f8] sm:$0xff]
    %v2476 = vld [vmem:[#allocation5 + $0x330] sm:$0xff]
    %v2477 = vld [vmem:[#allocation5 + $0x338] sm:$0xff]
    %v2478 = vld [vmem:[#allocation5 + $0x370] sm:$0xff]
    %v2479 = vld [vmem:[#allocation5 + $0x378] sm:$0xff]
    %v2480 = vld [vmem:[#allocation5 + $0x3b0] sm:$0xff]
    %v2481 = vld [vmem:[#allocation5 + $0x3b8] sm:$0xff]
    %v2482 = vld [vmem:[#allocation5 + $0x3f0] sm:$0xff]
    %v2483 = vld [vmem:[#allocation5 + $0x3f8] sm:$0xff]
    %v2484 = vld [vmem:[#allocation7 + $0xc] sm:$0xf]
    %v2486 = vlaneseq
    %v2487 = vshrl.u32 %v2486, 7
    %v2488 = vsub.s32 0, %v2487
    %v2489 = vrot.slane %v2484, %v2488
    %v2490 = vlaneseq
    %v2491 = vshrl.u32 %v2490, 7
    %v2492 = vsub.s32 1, %v2491
    %v2493 = vrot.slane %v2484, %v2492
    %v2494 = vlaneseq
    %v2495 = vshrl.u32 %v2494, 7
    %v2496 = vsub.s32 2, %v2495
    %v2497 = vrot.slane %v2484, %v2496
    %v2498 = vlaneseq
    %v2499 = vshrl.u32 %v2498, 7
    %v2500 = vsub.s32 3, %v2499
    %v2501 = vrot.slane %v2484, %v2500
    %v2538 = vunpack.c.l.b16 %v2452
    %v2539 = vunpack.c.h.b16 %v2452
    %v2540 = vunpack.c.l.b16 %v2453
    %v2541 = vunpack.c.h.b16 %v2453
    %v2542 = vunpack.c.l.b16 %v2454
    %v2543 = vunpack.c.h.b16 %v2454
    %v2544 = vunpack.c.l.b16 %v2455
    %v2545 = vunpack.c.h.b16 %v2455
    %v2546 = vunpack.c.l.b16 %v2456
    %v2547 = vunpack.c.h.b16 %v2456
    %v2548 = vunpack.c.l.b16 %v2457
    %v2549 = vunpack.c.h.b16 %v2457
    %v2550 = vunpack.c.l.b16 %v2458
    %v2551 = vunpack.c.h.b16 %v2458
    %v2552 = vunpack.c.l.b16 %v2459
    %v2553 = vunpack.c.h.b16 %v2459
    %v2554 = vunpack.c.l.b16 %v2460
    %v2555 = vunpack.c.h.b16 %v2460
    %v2556 = vunpack.c.l.b16 %v2461
    %v2557 = vunpack.c.h.b16 %v2461
    %v2558 = vunpack.c.l.b16 %v2462
    %v2559 = vunpack.c.h.b16 %v2462
    %v2560 = vunpack.c.l.b16 %v2463
    %v2561 = vunpack.c.h.b16 %v2463
    %v2562 = vunpack.c.l.b16 %v2464
    %v2563 = vunpack.c.h.b16 %v2464
    %v2564 = vunpack.c.l.b16 %v2465
    %v2565 = vunpack.c.h.b16 %v2465
    %v2566 = vunpack.c.l.b16 %v2466
    %v2567 = vunpack.c.h.b16 %v2466
    %v2568 = vunpack.c.l.b16 %v2467
    %v2569 = vunpack.c.h.b16 %v2467
    %v2570 = vunpack.c.l.b16 %v2468
    %v2571 = vunpack.c.h.b16 %v2468
    %v2572 = vunpack.c.l.b16 %v2469
    %v2573 = vunpack.c.h.b16 %v2469
    %v2574 = vunpack.c.l.b16 %v2470
    %v2575 = vunpack.c.h.b16 %v2470
    %v2576 = vunpack.c.l.b16 %v2471
    %v2577 = vunpack.c.h.b16 %v2471
    %v2578 = vunpack.c.l.b16 %v2472
    %v2579 = vunpack.c.h.b16 %v2472
    %v2580 = vunpack.c.l.b16 %v2473
    %v2581 = vunpack.c.h.b16 %v2473
    %v2582 = vunpack.c.l.b16 %v2474
    %v2583 = vunpack.c.h.b16 %v2474
    %v2584 = vunpack.c.l.b16 %v2475
    %v2585 = vunpack.c.h.b16 %v2475
    %v2586 = vunpack.c.l.b16 %v2476
    %v2587 = vunpack.c.h.b16 %v2476
    %v2588 = vunpack.c.l.b16 %v2477
    %v2589 = vunpack.c.h.b16 %v2477
    %v2590 = vunpack.c.l.b16 %v2478
    %v2591 = vunpack.c.h.b16 %v2478
    %v2592 = vunpack.c.l.b16 %v2479
    %v2593 = vunpack.c.h.b16 %v2479
    %v2594 = vunpack.c.l.b16 %v2480
    %v2595 = vunpack.c.h.b16 %v2480
    %v2596 = vunpack.c.l.b16 %v2481
    %v2597 = vunpack.c.h.b16 %v2481
    %v2598 = vunpack.c.l.b16 %v2482
    %v2599 = vunpack.c.h.b16 %v2482
    %v2600 = vunpack.c.l.b16 %v2483
    %v2601 = vunpack.c.h.b16 %v2483
    %v2602 = vpack.c.b16 %v2542, %v2538
    %v2603 = vpack.c.b16 %v2543, %v2539
    %v2604 = vpack.c.b16 %v2544, %v2540
    %v2605 = vpack.c.b16 %v2545, %v2541
    %v2606 = vpack.c.b16 %v2550, %v2546
    %v2607 = vpack.c.b16 %v2551, %v2547
    %v2608 = vpack.c.b16 %v2552, %v2548
    %v2609 = vpack.c.b16 %v2553, %v2549
    %v2610 = vpack.c.b16 %v2558, %v2554
    %v2611 = vpack.c.b16 %v2559, %v2555
    %v2612 = vpack.c.b16 %v2560, %v2556
    %v2613 = vpack.c.b16 %v2561, %v2557
    %v2614 = vpack.c.b16 %v2566, %v2562
    %v2615 = vpack.c.b16 %v2567, %v2563
    %v2616 = vpack.c.b16 %v2568, %v2564
    %v2617 = vpack.c.b16 %v2569, %v2565
    %v2618 = vpack.c.b16 %v2574, %v2570
    %v2619 = vpack.c.b16 %v2575, %v2571
    %v2620 = vpack.c.b16 %v2576, %v2572
    %v2621 = vpack.c.b16 %v2577, %v2573
    %v2622 = vpack.c.b16 %v2582, %v2578
    %v2623 = vpack.c.b16 %v2583, %v2579
    %v2624 = vpack.c.b16 %v2584, %v2580
    %v2625 = vpack.c.b16 %v2585, %v2581
    %v2626 = vpack.c.b16 %v2590, %v2586
    %v2627 = vpack.c.b16 %v2591, %v2587
    %v2628 = vpack.c.b16 %v2592, %v2588
    %v2629 = vpack.c.b16 %v2593, %v2589
    %v2630 = vpack.c.b16 %v2598, %v2594
    %v2631 = vpack.c.b16 %v2599, %v2595
    %v2632 = vpack.c.b16 %v2600, %v2596
    %v2633 = vpack.c.b16 %v2601, %v2597
    %2666 = vmatprep.subr.bf16.mxu0 %v2603
    %2667 = vmatpush1.bf16.msra.mxu0 %v2602
    %2668 = vmatprep.subr.bf16.mxu0 %v2607
    %2669 = vmatpush1.bf16.msra.mxu0 %v2606
    %2670 = vmatprep.subr.bf16.mxu0 %v2611
    %2671 = vmatpush1.bf16.msra.mxu0 %v2610
    %2672 = vmatprep.subr.bf16.mxu0 %v2615
    %2673 = vmatpush1.bf16.msra.mxu0 %v2614
    %2674 = vmatprep.subr.bf16.mxu0 %v2619
    %2675 = vmatpush1.bf16.msra.mxu0 %v2618
    %2676 = vmatprep.subr.bf16.mxu0 %v2623
    %2677 = vmatpush1.bf16.msra.mxu0 %v2622
    %2678 = vmatprep.subr.bf16.mxu0 %v2627
    %2679 = vmatpush1.bf16.msra.mxu0 %v2626
    %2680 = vmatprep.subr.bf16.mxu0 %v2631
    %2681 = vmatpush1.bf16.msra.mxu0 %v2630
    %2682 = vmatprep.subr.bf16.mxu0 0
    %2683 = vmatpush1.bf16.msra.mxu0 0
    %2684 = vmatprep.subr.bf16.mxu0 0
    %2685 = vmatpush1.bf16.msra.mxu0 0
    %2686 = vmatprep.subr.bf16.mxu0 0
    %2687 = vmatpush1.bf16.msra.mxu0 0
    %2688 = vmatprep.subr.bf16.mxu0 0
    %2689 = vmatpush1.bf16.msra.mxu0 0
    %2690 = vmatprep.subr.bf16.mxu0 0
    %2691 = vmatpush1.bf16.msra.mxu0 0
    %2692 = vmatprep.subr.bf16.mxu0 0
    %2693 = vmatpush1.bf16.msra.mxu0 0
    %2694 = vmatprep.subr.bf16.mxu0 0
    %2695 = vmatpush1.bf16.msra.mxu0 0
    %2696 = vmatprep.subr.bf16.mxu0 0
    %2697 = vmatpush1.bf16.msra.mxu0 0
    %2698 = vmatprep.mubr.bf16.mxu0 0
    %2699 = vmatmul.mubr.bf16.gmra.mrb[0].mxu0 %v77
    %v2700 = vpop.f32.mrb[0].mxu0
    %v2701 = vadd.f32 %v2489, %v2700
    %v2702 = vpop.f32.mrb[0].mxu0
    %v2703 = vadd.f32 %v2493, %v2702
    %v2704 = vpop.f32.mrb[0].mxu0
    %v2705 = vadd.f32 %v2489, %v2704
    %v2706 = vpop.f32.mrb[0].mxu0
    %v2707 = vadd.f32 %v2493, %v2706
    %2708 = vdwg.mxu0
    %2709 = vmatprep.subr.bf16.mxu0 %v2605
    %2710 = vmatpush1.bf16.msra.mxu0 %v2604
    %2711 = vmatprep.subr.bf16.mxu0 %v2609
    %2712 = vmatpush1.bf16.msra.mxu0 %v2608
    %2713 = vmatprep.subr.bf16.mxu0 %v2613
    %2714 = vmatpush1.bf16.msra.mxu0 %v2612
    %2715 = vmatprep.subr.bf16.mxu0 %v2617
    %2716 = vmatpush1.bf16.msra.mxu0 %v2616
    %2717 = vmatprep.subr.bf16.mxu0 %v2621
    %2718 = vmatpush1.bf16.msra.mxu0 %v2620
    %2719 = vmatprep.subr.bf16.mxu0 %v2625
    %2720 = vmatpush1.bf16.msra.mxu0 %v2624
    %2721 = vmatprep.subr.bf16.mxu0 %v2629
    %2722 = vmatpush1.bf16.msra.mxu0 %v2628
    %2723 = vmatprep.subr.bf16.mxu0 %v2633
    %2724 = vmatpush1.bf16.msra.mxu0 %v2632
    %2725 = vmatprep.subr.bf16.mxu0 0
    %2726 = vmatpush1.bf16.msra.mxu0 0
    %2727 = vmatprep.subr.bf16.mxu0 0
    %2728 = vmatpush1.bf16.msra.mxu0 0
    %2729 = vmatprep.subr.bf16.mxu0 0
    %2730 = vmatpush1.bf16.msra.mxu0 0
    %2731 = vmatprep.subr.bf16.mxu0 0
    %2732 = vmatpush1.bf16.msra.mxu0 0
    %2733 = vmatprep.subr.bf16.mxu0 0
    %2734 = vmatpush1.bf16.msra.mxu0 0
    %2735 = vmatprep.subr.bf16.mxu0 0
    %2736 = vmatpush1.bf16.msra.mxu0 0
    %2737 = vmatprep.subr.bf16.mxu0 0
    %2738 = vmatpush1.bf16.msra.mxu0 0
    %2739 = vmatprep.subr.bf16.mxu0 0
    %2740 = vmatpush1.bf16.msra.mxu0 0
    %2741 = vmatprep.mubr.bf16.mxu0 0
    %2742 = vmatmul.mubr.bf16.gmra.mrb[0].mxu0 %v77
    %v2743 = vpop.f32.mrb[0].mxu0
    %v2744 = vadd.f32 %v2497, %v2743
    %v2745 = vpop.f32.mrb[0].mxu0
    %v2746 = vadd.f32 %v2501, %v2745
    %v2747 = vpop.f32.mrb[0].mxu0
    %v2748 = vadd.f32 %v2497, %v2747
    %v2749 = vpop.f32.mrb[0].mxu0
    %v2750 = vadd.f32 %v2501, %v2749
    %2751 = vdwg.mxu0
    %v2752 = vmax.f32 %v2701, 0.0
    %v2753 = vmax.f32 %v2703, 0.0
    %v2754 = vmax.f32 %v2744, 0.0
    %v2755 = vmax.f32 %v2746, 0.0
    %v2756 = vmax.f32 %v2705, 0.0
    %v2757 = vmax.f32 %v2707, 0.0
    %v2758 = vmax.f32 %v2748, 0.0
    %v2759 = vmax.f32 %v2750, 0.0
    %v2760 = vpack.c.bf16 %v2756, %v2752
    %v2761 = vpack.c.bf16 %v2757, %v2753
    %v2762 = vpack.c.bf16 %v2758, %v2754
    %v2763 = vpack.c.bf16 %v2759, %v2755
    %v2764 = vld [vmem:[#allocation8 + $0x600] sm:$0xff]
    %v2765 = vld [vmem:[#allocation8 + $0x608] sm:$0xff]
    %v2766 = vld [vmem:[#allocation8 + $0x610] sm:$0xff]
    %v2767 = vld [vmem:[#allocation8 + $0x618] sm:$0xff]
    %v2768 = vld [vmem:[#allocation8 + $0x620] sm:$0xff]
    %v2769 = vld [vmem:[#allocation8 + $0x628] sm:$0xff]
    %v2770 = vld [vmem:[#allocation8 + $0x630] sm:$0xff]
    %v2771 = vld [vmem:[#allocation8 + $0x638] sm:$0xff]
    %v2772 = vld [vmem:[#allocation8 + $0x640] sm:$0xff]
    %v2773 = vld [vmem:[#allocation8 + $0x648] sm:$0xff]
    %v2774 = vld [vmem:[#allocation8 + $0x650] sm:$0xff]
    %v2775 = vld [vmem:[#allocation8 + $0x658] sm:$0xff]
    %v2776 = vld [vmem:[#allocation8 + $0x660] sm:$0xff]
    %v2777 = vld [vmem:[#allocation8 + $0x668] sm:$0xff]
    %v2778 = vld [vmem:[#allocation8 + $0x670] sm:$0xff]
    %v2779 = vld [vmem:[#allocation8 + $0x678] sm:$0xff]
    %v2780 = vld [vmem:[#allocation8 + $0x680] sm:$0xff]
    %v2781 = vld [vmem:[#allocation8 + $0x688] sm:$0xff]
    %v2782 = vld [vmem:[#allocation8 + $0x690] sm:$0xff]
    %v2783 = vld [vmem:[#allocation8 + $0x698] sm:$0xff]
    %v2784 = vld [vmem:[#allocation8 + $0x6a0] sm:$0xff]
    %v2785 = vld [vmem:[#allocation8 + $0x6a8] sm:$0xff]
    %v2786 = vld [vmem:[#allocation8 + $0x6b0] sm:$0xff]
    %v2787 = vld [vmem:[#allocation8 + $0x6b8] sm:$0xff]
    %v2788 = vld [vmem:[#allocation8 + $0x6c0] sm:$0xff]
    %v2789 = vld [vmem:[#allocation8 + $0x6c8] sm:$0xff]
    %v2790 = vld [vmem:[#allocation8 + $0x6d0] sm:$0xff]
    %v2791 = vld [vmem:[#allocation8 + $0x6d8] sm:$0xff]
    %v2792 = vld [vmem:[#allocation8 + $0x6e0] sm:$0xff]
    %v2793 = vld [vmem:[#allocation8 + $0x6e8] sm:$0xff]
    %v2794 = vld [vmem:[#allocation8 + $0x6f0] sm:$0xff]
    %v2795 = vld [vmem:[#allocation8 + $0x6f8] sm:$0xff]
    %v2796 = vld [vmem:[#allocation8 + $0x700] sm:$0xff]
    %v2797 = vld [vmem:[#allocation8 + $0x708] sm:$0xff]
    %v2798 = vld [vmem:[#allocation8 + $0x710] sm:$0xff]
    %v2799 = vld [vmem:[#allocation8 + $0x718] sm:$0xff]
    %v2800 = vld [vmem:[#allocation8 + $0x720] sm:$0xff]
    %v2801 = vld [vmem:[#allocation8 + $0x728] sm:$0xff]
    %v2802 = vld [vmem:[#allocation8 + $0x730] sm:$0xff]
    %v2803 = vld [vmem:[#allocation8 + $0x738] sm:$0xff]
    %v2804 = vld [vmem:[#allocation8 + $0x740] sm:$0xff]
    %v2805 = vld [vmem:[#allocation8 + $0x748] sm:$0xff]
    %v2806 = vld [vmem:[#allocation8 + $0x750] sm:$0xff]
    %v2807 = vld [vmem:[#allocation8 + $0x758] sm:$0xff]
    %v2808 = vld [vmem:[#allocation8 + $0x760] sm:$0xff]
    %v2809 = vld [vmem:[#allocation8 + $0x768] sm:$0xff]
    %v2810 = vld [vmem:[#allocation8 + $0x770] sm:$0xff]
    %v2811 = vld [vmem:[#allocation8 + $0x778] sm:$0xff]
    %v2812 = vld [vmem:[#allocation8 + $0x780] sm:$0xff]
    %v2813 = vld [vmem:[#allocation8 + $0x788] sm:$0xff]
    %v2814 = vld [vmem:[#allocation8 + $0x790] sm:$0xff]
    %v2815 = vld [vmem:[#allocation8 + $0x798] sm:$0xff]
    %v2816 = vld [vmem:[#allocation8 + $0x7a0] sm:$0xff]
    %v2817 = vld [vmem:[#allocation8 + $0x7a8] sm:$0xff]
    %v2818 = vld [vmem:[#allocation8 + $0x7b0] sm:$0xff]
    %v2819 = vld [vmem:[#allocation8 + $0x7b8] sm:$0xff]
    %v2820 = vld [vmem:[#allocation8 + $0x7c0] sm:$0xff]
    %v2821 = vld [vmem:[#allocation8 + $0x7c8] sm:$0xff]
    %v2822 = vld [vmem:[#allocation8 + $0x7d0] sm:$0xff]
    %v2823 = vld [vmem:[#allocation8 + $0x7d8] sm:$0xff]
    %v2824 = vld [vmem:[#allocation8 + $0x7e0] sm:$0xff]
    %v2825 = vld [vmem:[#allocation8 + $0x7e8] sm:$0xff]
    %v2826 = vld [vmem:[#allocation8 + $0x7f0] sm:$0xff]
    %v2827 = vld [vmem:[#allocation8 + $0x7f8] sm:$0xff]
    %v2892 = vunpack.c.l.b16 %v2764
    %v2893 = vunpack.c.h.b16 %v2764
    %v2894 = vunpack.c.l.b16 %v2765
    %v2895 = vunpack.c.h.b16 %v2765
    %v2896 = vunpack.c.l.b16 %v2766
    %v2897 = vunpack.c.h.b16 %v2766
    %v2898 = vunpack.c.l.b16 %v2767
    %v2899 = vunpack.c.h.b16 %v2767
    %v2900 = vunpack.c.l.b16 %v2768
    %v2901 = vunpack.c.h.b16 %v2768
    %v2902 = vunpack.c.l.b16 %v2769
    %v2903 = vunpack.c.h.b16 %v2769
    %v2904 = vunpack.c.l.b16 %v2770
    %v2905 = vunpack.c.h.b16 %v2770
    %v2906 = vunpack.c.l.b16 %v2771
    %v2907 = vunpack.c.h.b16 %v2771
    %v2908 = vunpack.c.l.b16 %v2772
    %v2909 = vunpack.c.h.b16 %v2772
    %v2910 = vunpack.c.l.b16 %v2773
    %v2911 = vunpack.c.h.b16 %v2773
    %v2912 = vunpack.c.l.b16 %v2774
    %v2913 = vunpack.c.h.b16 %v2774
    %v2914 = vunpack.c.l.b16 %v2775
    %v2915 = vunpack.c.h.b16 %v2775
    %v2916 = vunpack.c.l.b16 %v2776
    %v2917 = vunpack.c.h.b16 %v2776
    %v2918 = vunpack.c.l.b16 %v2777
    %v2919 = vunpack.c.h.b16 %v2777
    %v2920 = vunpack.c.l.b16 %v2778
    %v2921 = vunpack.c.h.b16 %v2778
    %v2922 = vunpack.c.l.b16 %v2779
    %v2923 = vunpack.c.h.b16 %v2779
    %v2924 = vunpack.c.l.b16 %v2780
    %v2925 = vunpack.c.h.b16 %v2780
    %v2926 = vunpack.c.l.b16 %v2781
    %v2927 = vunpack.c.h.b16 %v2781
    %v2928 = vunpack.c.l.b16 %v2782
    %v2929 = vunpack.c.h.b16 %v2782
    %v2930 = vunpack.c.l.b16 %v2783
    %v2931 = vunpack.c.h.b16 %v2783
    %v2932 = vunpack.c.l.b16 %v2784
    %v2933 = vunpack.c.h.b16 %v2784
    %v2934 = vunpack.c.l.b16 %v2785
    %v2935 = vunpack.c.h.b16 %v2785
    %v2936 = vunpack.c.l.b16 %v2786
    %v2937 = vunpack.c.h.b16 %v2786
    %v2938 = vunpack.c.l.b16 %v2787
    %v2939 = vunpack.c.h.b16 %v2787
    %v2940 = vunpack.c.l.b16 %v2788
    %v2941 = vunpack.c.h.b16 %v2788
    %v2942 = vunpack.c.l.b16 %v2789
    %v2943 = vunpack.c.h.b16 %v2789
    %v2944 = vunpack.c.l.b16 %v2790
    %v2945 = vunpack.c.h.b16 %v2790
    %v2946 = vunpack.c.l.b16 %v2791
    %v2947 = vunpack.c.h.b16 %v2791
    %v2948 = vunpack.c.l.b16 %v2792
    %v2949 = vunpack.c.h.b16 %v2792
    %v2950 = vunpack.c.l.b16 %v2793
    %v2951 = vunpack.c.h.b16 %v2793
    %v2952 = vunpack.c.l.b16 %v2794
    %v2953 = vunpack.c.h.b16 %v2794
    %v2954 = vunpack.c.l.b16 %v2795
    %v2955 = vunpack.c.h.b16 %v2795
    %v2956 = vunpack.c.l.b16 %v2796
    %v2957 = vunpack.c.h.b16 %v2796
    %v2958 = vunpack.c.l.b16 %v2797
    %v2959 = vunpack.c.h.b16 %v2797
    %v2960 = vunpack.c.l.b16 %v2798
    %v2961 = vunpack.c.h.b16 %v2798
    %v2962 = vunpack.c.l.b16 %v2799
    %v2963 = vunpack.c.h.b16 %v2799
    %v2964 = vunpack.c.l.b16 %v2800
    %v2965 = vunpack.c.h.b16 %v2800
    %v2966 = vunpack.c.l.b16 %v2801
    %v2967 = vunpack.c.h.b16 %v2801
    %v2968 = vunpack.c.l.b16 %v2802
    %v2969 = vunpack.c.h.b16 %v2802
    %v2970 = vunpack.c.l.b16 %v2803
    %v2971 = vunpack.c.h.b16 %v2803
    %v2972 = vunpack.c.l.b16 %v2804
    %v2973 = vunpack.c.h.b16 %v2804
    %v2974 = vunpack.c.l.b16 %v2805
    %v2975 = vunpack.c.h.b16 %v2805
    %v2976 = vunpack.c.l.b16 %v2806
    %v2977 = vunpack.c.h.b16 %v2806
    %v2978 = vunpack.c.l.b16 %v2807
    %v2979 = vunpack.c.h.b16 %v2807
    %v2980 = vunpack.c.l.b16 %v2808
    %v2981 = vunpack.c.h.b16 %v2808
    %v2982 = vunpack.c.l.b16 %v2809
    %v2983 = vunpack.c.h.b16 %v2809
    %v2984 = vunpack.c.l.b16 %v2810
    %v2985 = vunpack.c.h.b16 %v2810
    %v2986 = vunpack.c.l.b16 %v2811
    %v2987 = vunpack.c.h.b16 %v2811
    %v2988 = vunpack.c.l.b16 %v2812
    %v2989 = vunpack.c.h.b16 %v2812
    %v2990 = vunpack.c.l.b16 %v2813
    %v2991 = vunpack.c.h.b16 %v2813
    %v2992 = vunpack.c.l.b16 %v2814
    %v2993 = vunpack.c.h.b16 %v2814
    %v2994 = vunpack.c.l.b16 %v2815
    %v2995 = vunpack.c.h.b16 %v2815
    %v2996 = vunpack.c.l.b16 %v2816
    %v2997 = vunpack.c.h.b16 %v2816
    %v2998 = vunpack.c.l.b16 %v2817
    %v2999 = vunpack.c.h.b16 %v2817
    %v3000 = vunpack.c.l.b16 %v2818
    %v3001 = vunpack.c.h.b16 %v2818
    %v3002 = vunpack.c.l.b16 %v2819
    %v3003 = vunpack.c.h.b16 %v2819
    %v3004 = vunpack.c.l.b16 %v2820
    %v3005 = vunpack.c.h.b16 %v2820
    %v3006 = vunpack.c.l.b16 %v2821
    %v3007 = vunpack.c.h.b16 %v2821
    %v3008 = vunpack.c.l.b16 %v2822
    %v3009 = vunpack.c.h.b16 %v2822
    %v3010 = vunpack.c.l.b16 %v2823
    %v3011 = vunpack.c.h.b16 %v2823
    %v3012 = vunpack.c.l.b16 %v2824
    %v3013 = vunpack.c.h.b16 %v2824
    %v3014 = vunpack.c.l.b16 %v2825
    %v3015 = vunpack.c.h.b16 %v2825
    %v3016 = vunpack.c.l.b16 %v2826
    %v3017 = vunpack.c.h.b16 %v2826
    %v3018 = vunpack.c.l.b16 %v2827
    %v3019 = vunpack.c.h.b16 %v2827
    %v3020 = vpack.c.b16 %v2894, %v2892
    %v3021 = vpack.c.b16 %v2895, %v2893
    %v3022 = vpack.c.b16 %v2898, %v2896
    %v3023 = vpack.c.b16 %v2899, %v2897
    %v3024 = vpack.c.b16 %v2902, %v2900
    %v3025 = vpack.c.b16 %v2903, %v2901
    %v3026 = vpack.c.b16 %v2906, %v2904
    %v3027 = vpack.c.b16 %v2907, %v2905
    %v3028 = vpack.c.b16 %v2910, %v2908
    %v3029 = vpack.c.b16 %v2911, %v2909
    %v3030 = vpack.c.b16 %v2914, %v2912
    %v3031 = vpack.c.b16 %v2915, %v2913
    %v3032 = vpack.c.b16 %v2918, %v2916
    %v3033 = vpack.c.b16 %v2919, %v2917
    %v3034 = vpack.c.b16 %v2922, %v2920
    %v3035 = vpack.c.b16 %v2923, %v2921
    %v3036 = vpack.c.b16 %v2926, %v2924
    %v3037 = vpack.c.b16 %v2927, %v2925
    %v3038 = vpack.c.b16 %v2930, %v2928
    %v3039 = vpack.c.b16 %v2931, %v2929
    %v3040 = vpack.c.b16 %v2934, %v2932
    %v3041 = vpack.c.b16 %v2935, %v2933
    %v3042 = vpack.c.b16 %v2938, %v2936
    %v3043 = vpack.c.b16 %v2939, %v2937
    %v3044 = vpack.c.b16 %v2942, %v2940
    %v3045 = vpack.c.b16 %v2943, %v2941
    %v3046 = vpack.c.b16 %v2946, %v2944
    %v3047 = vpack.c.b16 %v2947, %v2945
    %v3048 = vpack.c.b16 %v2950, %v2948
    %v3049 = vpack.c.b16 %v2951, %v2949
    %v3050 = vpack.c.b16 %v2954, %v2952
    %v3051 = vpack.c.b16 %v2955, %v2953
    %v3052 = vpack.c.b16 %v2958, %v2956
    %v3053 = vpack.c.b16 %v2959, %v2957
    %v3054 = vpack.c.b16 %v2962, %v2960
    %v3055 = vpack.c.b16 %v2963, %v2961
    %v3056 = vpack.c.b16 %v2966, %v2964
    %v3057 = vpack.c.b16 %v2967, %v2965
    %v3058 = vpack.c.b16 %v2970, %v2968
    %v3059 = vpack.c.b16 %v2971, %v2969
    %v3060 = vpack.c.b16 %v2974, %v2972
    %v3061 = vpack.c.b16 %v2975, %v2973
    %v3062 = vpack.c.b16 %v2978, %v2976
    %v3063 = vpack.c.b16 %v2979, %v2977
    %v3064 = vpack.c.b16 %v2982, %v2980
    %v3065 = vpack.c.b16 %v2983, %v2981
    %v3066 = vpack.c.b16 %v2986, %v2984
    %v3067 = vpack.c.b16 %v2987, %v2985
    %v3068 = vpack.c.b16 %v2990, %v2988
    %v3069 = vpack.c.b16 %v2991, %v2989
    %v3070 = vpack.c.b16 %v2994, %v2992
    %v3071 = vpack.c.b16 %v2995, %v2993
    %v3072 = vpack.c.b16 %v2998, %v2996
    %v3073 = vpack.c.b16 %v2999, %v2997
    %v3074 = vpack.c.b16 %v3002, %v3000
    %v3075 = vpack.c.b16 %v3003, %v3001
    %v3076 = vpack.c.b16 %v3006, %v3004
    %v3077 = vpack.c.b16 %v3007, %v3005
    %v3078 = vpack.c.b16 %v3010, %v3008
    %v3079 = vpack.c.b16 %v3011, %v3009
    %v3080 = vpack.c.b16 %v3014, %v3012
    %v3081 = vpack.c.b16 %v3015, %v3013
    %v3082 = vpack.c.b16 %v3018, %v3016
    %v3083 = vpack.c.b16 %v3019, %v3017
    %3148 = vmatprep.subr.bf16.mxu0 %v3021
    %3149 = vmatpush1.bf16.msra.mxu0 %v3020
    %3150 = vmatprep.subr.bf16.mxu0 %v3023
    %3151 = vmatpush1.bf16.msra.mxu0 %v3022
    %3152 = vmatprep.subr.bf16.mxu0 %v3025
    %3153 = vmatpush1.bf16.msra.mxu0 %v3024
    %3154 = vmatprep.subr.bf16.mxu0 %v3027
    %3155 = vmatpush1.bf16.msra.mxu0 %v3026
    %3156 = vmatprep.subr.bf16.mxu0 %v3029
    %3157 = vmatpush1.bf16.msra.mxu0 %v3028
    %3158 = vmatprep.subr.bf16.mxu0 %v3031
    %3159 = vmatpush1.bf16.msra.mxu0 %v3030
    %3160 = vmatprep.subr.bf16.mxu0 %v3033
    %3161 = vmatpush1.bf16.msra.mxu0 %v3032
    %3162 = vmatprep.subr.bf16.mxu0 %v3035
    %3163 = vmatpush1.bf16.msra.mxu0 %v3034
    %3164 = vmatprep.subr.bf16.mxu0 %v3037
    %3165 = vmatpush1.bf16.msra.mxu0 %v3036
    %3166 = vmatprep.subr.bf16.mxu0 %v3039
    %3167 = vmatpush1.bf16.msra.mxu0 %v3038
    %3168 = vmatprep.subr.bf16.mxu0 %v3041
    %3169 = vmatpush1.bf16.msra.mxu0 %v3040
    %3170 = vmatprep.subr.bf16.mxu0 %v3043
    %3171 = vmatpush1.bf16.msra.mxu0 %v3042
    %3172 = vmatprep.subr.bf16.mxu0 %v3045
    %3173 = vmatpush1.bf16.msra.mxu0 %v3044
    %3174 = vmatprep.subr.bf16.mxu0 %v3047
    %3175 = vmatpush1.bf16.msra.mxu0 %v3046
    %3176 = vmatprep.subr.bf16.mxu0 %v3049
    %3177 = vmatpush1.bf16.msra.mxu0 %v3048
    %3178 = vmatprep.subr.bf16.mxu0 %v3051
    %3179 = vmatpush1.bf16.msra.mxu0 %v3050
    %3180 = vmatprep.mubr.bf16.mxu0 %v2761
    %3181 = vmatmul.mubr.bf16.gmra.mrb[0].mxu0 %v2760
    %v3182 = vpop.f32.mrb[0].mxu0
    %v3183 = vadd.f32 0.0, %v3182
    %v3184 = vpop.f32.mrb[0].mxu0
    %v3185 = vadd.f32 0.0, %v3184
    %v3186 = vpop.f32.mrb[0].mxu0
    %v3187 = vadd.f32 0.0, %v3186
    %v3188 = vpop.f32.mrb[0].mxu0
    %v3189 = vadd.f32 0.0, %v3188
    %3190 = vdwg.mxu0
    %3191 = vmatprep.subr.bf16.mxu0 %v3053
    %3192 = vmatpush1.bf16.msra.mxu0 %v3052
    %3193 = vmatprep.subr.bf16.mxu0 %v3055
    %3194 = vmatpush1.bf16.msra.mxu0 %v3054
    %3195 = vmatprep.subr.bf16.mxu0 %v3057
    %3196 = vmatpush1.bf16.msra.mxu0 %v3056
    %3197 = vmatprep.subr.bf16.mxu0 %v3059
    %3198 = vmatpush1.bf16.msra.mxu0 %v3058
    %3199 = vmatprep.subr.bf16.mxu0 %v3061
    %3200 = vmatpush1.bf16.msra.mxu0 %v3060
    %3201 = vmatprep.subr.bf16.mxu0 %v3063
    %3202 = vmatpush1.bf16.msra.mxu0 %v3062
    %3203 = vmatprep.subr.bf16.mxu0 %v3065
    %3204 = vmatpush1.bf16.msra.mxu0 %v3064
    %3205 = vmatprep.subr.bf16.mxu0 %v3067
    %3206 = vmatpush1.bf16.msra.mxu0 %v3066
    %3207 = vmatprep.subr.bf16.mxu0 %v3069
    %3208 = vmatpush1.bf16.msra.mxu0 %v3068
    %3209 = vmatprep.subr.bf16.mxu0 %v3071
    %3210 = vmatpush1.bf16.msra.mxu0 %v3070
    %3211 = vmatprep.subr.bf16.mxu0 %v3073
    %3212 = vmatpush1.bf16.msra.mxu0 %v3072
    %3213 = vmatprep.subr.bf16.mxu0 %v3075
    %3214 = vmatpush1.bf16.msra.mxu0 %v3074
    %3215 = vmatprep.subr.bf16.mxu0 %v3077
    %3216 = vmatpush1.bf16.msra.mxu0 %v3076
    %3217 = vmatprep.subr.bf16.mxu0 %v3079
    %3218 = vmatpush1.bf16.msra.mxu0 %v3078
    %3219 = vmatprep.subr.bf16.mxu0 %v3081
    %3220 = vmatpush1.bf16.msra.mxu0 %v3080
    %3221 = vmatprep.subr.bf16.mxu0 %v3083
    %3222 = vmatpush1.bf16.msra.mxu0 %v3082
    %3223 = vmatprep.mubr.bf16.mxu0 %v2763
    %3224 = vmatmul.mubr.bf16.gmra.mrb[0].mxu0 %v2762
    %v3225 = vpop.f32.mrb[0].mxu0
    %v3226 = vadd.f32 %v3183, %v3225
    %v3227 = vpop.f32.mrb[0].mxu0
    %v3228 = vadd.f32 %v3185, %v3227
    %v3229 = vpop.f32.mrb[0].mxu0
    %v3230 = vadd.f32 %v3187, %v3229
    %v3231 = vpop.f32.mrb[0].mxu0
    %v3232 = vadd.f32 %v3189, %v3231
    %3233 = vdwg.mxu0
    %v3234 = vld [vmem:[#allocation10] sm:$0xff]
    %v3235 = vld [vmem:[#allocation10 + $0x8] sm:$0xff]
    %v3236 = vld [vmem:[#allocation10 + $0x10] sm:$0xff]
    %v3237 = vld [vmem:[#allocation10 + $0x18] sm:$0xff]
    %v3238 = vadd.f32 %v3234, %v3226
    %v3239 = vadd.f32 %v3235, %v3228
    %v3240 = vadd.f32 %v3236, %v3230
    %v3241 = vadd.f32 %v3237, %v3232
    %3242 = vst [vmem:[#allocation10] sm:$0xff] %v3238
    %3243 = vst [vmem:[#allocation10 + $0x8] sm:$0xff] %v3239
    %3244 = vst [vmem:[#allocation10 + $0x10] sm:$0xff] %v3240
    %3245 = vst [vmem:[#allocation10 + $0x18] sm:$0xff] %v3241
    %v3246 = vld [vmem:[#allocation10] sm:$0xff]
    %v3247 = vld [vmem:[#allocation10 + $0x8] sm:$0xff]
    %v3248 = vld [vmem:[#allocation10 + $0x10] sm:$0xff]
    %v3249 = vld [vmem:[#allocation10 + $0x18] sm:$0xff]
    %v3250 = vld [vmem:[%s4] sm:$0x3]
    %v3252 = vlaneseq
    %v3253 = vshrl.u32 %v3252, 7
    %v3254 = vsub.s32 0, %v3253
    %v3255 = vrot.slane %v3250, %v3254
    %v3256 = vlaneseq
    %v3257 = vshrl.u32 %v3256, 7
    %v3258 = vsub.s32 1, %v3257
    %v3259 = vrot.slane %v3250, %v3258
    %v3262 = vadd.f32 %v3246, %v3255
    %v3263 = vadd.f32 %v3247, %v3259
    %v3264 = vadd.f32 %v3248, %v3255
    %v3265 = vadd.f32 %v3249, %v3259
    %v3266 = vxor.u32 %v3262, 2147483648
    %v3267 = vxor.u32 %v3263, 2147483648
    %v3268 = vxor.u32 %v3264, 2147483648
    %v3269 = vxor.u32 %v3265, 2147483648
    %v3270 = vmul.f32 %v3266, 1.442695
    %v3271 = vpow.pop %v3270
    %v3272 = vmul.f32 %v3267, 1.442695
    %v3273 = vpow.pop %v3272
    %v3274 = vmul.f32 %v3268, 1.442695
    %v3275 = vpow.pop %v3274
    %v3276 = vmul.f32 %v3269, 1.442695
    %v3277 = vpow.pop %v3276
    %v3278 = vadd.f32 %v3271, 1.0
    %v3279 = vadd.f32 %v3273, 1.0
    %v3280 = vadd.f32 %v3275, 1.0
    %v3281 = vadd.f32 %v3277, 1.0
    %v3282 = vrcp.pop %v3278
    %v3283 = vmul.f32 1.0, %v3282
    %v3284 = vrcp.pop %v3279
    %v3285 = vmul.f32 1.0, %v3284
    %v3286 = vrcp.pop %v3280
    %v3287 = vmul.f32 1.0, %v3286
    %v3288 = vrcp.pop %v3281
    %v3289 = vmul.f32 1.0, %v3288
    %3290 = vst [vmem:[#allocation10] sm:$0xff] %v3283
    %3291 = vst [vmem:[#allocation10 + $0x8] sm:$0xff] %v3285
    %3292 = vst [vmem:[#allocation10 + $0x10] sm:$0xff] %v3287
    %3293 = vst [vmem:[#allocation10 + $0x18] sm:$0xff] %v3289
    // Predicated region
    $region38: #{tpu_custom_call.1} parent=1 // pred_check
      _
    $region39: #{tpu_custom_call.1} parent=1 // pred_check_branch
      %3295 = sbr.rel (0) target = $region41
    $region40: #{tpu_custom_call.1} parent=1 // pred_region
      %s3297 = ssub.s32 512, 512
      %3298 = vsyncadd [#allocation4], %s3297
      %s3299 = sshll.u32 [#allocation10], 4
      %s3300 = int_to_ptr.vmem [resolvable:$true] %s3299
      %3305 = dma.vmem_to_hbm [thread:$0]  %s3300, 512, %s5, [#allocation4], 256, 256, 16
    $region41: #{tpu_custom_call.1} parent=1 // pred_fallthru
      _
    // Predicated region
    $region42: #{tpu_custom_call.1} parent=1 // pred_check
      _
    $region43: #{tpu_custom_call.1} parent=1 // pred_check_branch
      %3307 = sbr.rel (0) target = $region45
    $region44: #{tpu_custom_call.1} parent=1 // pred_region
      %3308 = dma.done [#allocation4], 512
    $region45: #{tpu_custom_call.1} parent=1 // pred_fallthru
      _
    %3309 = vsyncpa [#allocation3], 1
    %3310 = vsyncpa [#allocation6], 1
    %3311 = vsyncpa [#allocation9], 1
    %3312 = vsyncpa [#allocation4], 1

</llo_original>
